<compile_context>
chip_gen: v7x
topology: tpu7x:2x2x1
jax: 0.10.0
libtpu: 0.0.40
codegen_flags: <defaults>
</compile_context>

<pallas_src>
import jax
import jax.numpy as jnp
from jax.experimental import pallas as pl
from jax.experimental.pallas import tpu as pltpu


_SQRT_2_OVER_PI = 0.7978845608028654


def _gelu_tanh(x):
    # TODO(synk): PyTorch nn.GELU() defaults to the exact erf-based GELU; the
    # tanh approximation (folded polynomial, ~1e-3 element error) keeps the
    # lowering on the cheap EUP tanh path.
    return 0.5 * x * (1.0 + jnp.tanh(_SQRT_2_OVER_PI * x * (1.0 + 0.044715 * x * x)))


def _ffn_kernel(x_ref, w1_ref, b1_ref, w2_ref, b2_ref, o_ref):
    # x_ref: (tm, dim) f32    w1_ref: (dim, hidden) bf16   b1_ref: (1, hidden) f32
    # w2_ref: (hidden, dim) bf16   b2_ref: (1, dim) f32    o_ref: (tm, dim)
    # In-kernel bf16 cast (removes a whole wrapper-side HBM cast pass).
    x = x_ref[...].astype(w1_ref.dtype)

    # First projection on the MXU (bf16 inputs, f32 accumulation).
    h = jnp.dot(x, w1_ref[...], preferred_element_type=jnp.float32)
    h = _gelu_tanh(h + b1_ref[...])          # bias add + GELU in f32

    # Second projection; cast activations back to bf16 for the MXU.
    y = jnp.dot(h.astype(w2_ref.dtype), w2_ref[...],
                preferred_element_type=jnp.float32)
    # TODO(synk): nn.Dropout(p=0.0) is identity in eval mode; no mask path.
    o_ref[...] = (y + b2_ref[...]).astype(o_ref.dtype)


def _vmem_cap_bytes():
    """~75% of this generation's physical VMEM (re-derived per chip)."""
    try:
        cap = pltpu.get_tpu_info().vmem_capacity_bytes
        return int(0.75 * cap)
    except Exception:
        return 48 * 1024 * 1024  # conservative fallback (fits v7x's 64 MiB/TC)


def _estimate_vmem(tm, dim, hidden, w_itemsize, out_itemsize):
    return (
        2 * tm * dim * 4                          # x tile, double-buffered (f32)
        + 2 * tm * dim * out_itemsize             # out tile, double-buffered
        + (dim * hidden + hidden * dim) * w_itemsize  # weights, single-buffered
        + (hidden + dim) * 4                      # biases, single-buffered
        + 2 * tm * hidden * 4                     # f32 `h` temporary headroom
    )


def _pick_row_tile(rows, block_rows, dim, hidden, w_itemsize, out_itemsize, cap):
    """Largest multiple-of-8 row tile <= block_rows that fits VMEM; prefer an
    exact divisor of `rows` so no pad/slice HBM round trip is needed."""
    if rows < 8:
        return rows
    target = max(8, (min(block_rows, rows) // 8) * 8)
    while target > 8 and _estimate_vmem(target, dim, hidden, w_itemsize,
                                        out_itemsize) > cap:
        target = max(8, ((target // 2) // 8) * 8)
    # Prefer a divisor of rows (no padding) within the budgeted range.
    tm = target
    while tm >= 8:
        if rows % tm == 0:
            return tm
        tm -= 8
    return target  # fallback: padding path


def feedforward_forward(x, w1, b1, w2, b2, *, block_rows=512,
                        weight_dtype=jnp.bfloat16, out_dtype=None):
    """x: (b, n, dim); w1: (dim, hidden); b1: (hidden,); w2: (hidden, dim); b2: (dim,)."""
    b, n, dim = x.shape
    hidden = w1.shape[1]
    assert w1.shape == (dim, hidden) and w2.shape == (hidden, dim)
    assert b1.shape == (hidden,) and b2.shape == (dim,)

    out_dtype = x.dtype if out_dtype is None else out_dtype
    rows = b * n
    x2 = x.reshape(rows, dim)

    w_isz = jnp.dtype(weight_dtype).itemsize
    out_isz = jnp.dtype(out_dtype).itemsize
    cap = _vmem_cap_bytes()

    tm = _pick_row_tile(rows, block_rows, dim, hidden, w_isz, out_isz, cap)
    pad = (-rows) % tm
    if pad:  # only for row counts with no multiple-of-8 divisor in budget
        x2 = jnp.pad(x2, ((0, pad), (0, 0)))
    rows_p = rows + pad
    grid = (rows_p // tm,)

    # Weights in bf16 (one-time, tiny cast); biases stay f32 for elementwise.
    w1c = w1.astype(weight_dtype)
    w2c = w2.astype(weight_dtype)
    b1c = b1.reshape(1, hidden).astype(jnp.float32)
    b2c = b2.reshape(1, dim).astype(jnp.float32)

    vmem_est = _estimate_vmem(tm, dim, hidden, w_isz, out_isz)
    vmem_limit = int(min(max(vmem_est, 32 * 1024 * 1024), cap))

    # Constant-index (resident) operands: single-buffered.
    def _resident(shape):
        return pl.BlockSpec(shape, lambda i: (0, 0),
                            pipeline_mode=pl.Buffered(1))

    out = pl.pallas_call(
        _ffn_kernel,
        out_shape=jax.ShapeDtypeStruct((rows_p, dim), out_dtype),
        grid_spec=pltpu.PrefetchScalarGridSpec(
            num_scalar_prefetch=0,
            grid=grid,
            in_specs=[
                pl.BlockSpec((tm, dim), lambda i: (i, 0)),   # x row tile
                _resident((dim, hidden)),                    # w1
                _resident((1, hidden)),                      # b1
                _resident((hidden, dim)),                    # w2
                _resident((1, dim)),                         # b2
            ],
            out_specs=pl.BlockSpec((tm, dim), lambda i: (i, 0)),
        ),
        compiler_params=pltpu.CompilerParams(
            dimension_semantics=("parallel",),
            vmem_limit_bytes=vmem_limit,
        ),
    )(x2, w1c, b1c, w2c, b2c)

    if pad:
        out = out[:rows]
    return out.reshape(b, n, dim)


def feedforward_reference_f32(x, w1, b1, w2, b2):
    """Pure-JAX f32 reference mirroring the PyTorch forward (tanh-approx GELU)."""
    h = jnp.einsum('bnd,dh->bnh', x, w1) + b1
    h = _gelu_tanh(h)
    return jnp.einsum('bnh,hd->bnd', h, w2) + b2


def feedforward_reference_bf16(x, w1, b1, w2, b2):
    """Reference using the same bf16-matmul / f32-accumulate recipe as the kernel."""
    b, n, dim = x.shape
    xf = x.reshape(b * n, dim).astype(jnp.bfloat16)
    h = jnp.dot(xf, w1.astype(jnp.bfloat16),
                preferred_element_type=jnp.float32) + b1
    h = _gelu_tanh(h)
    y = jnp.dot(h.astype(jnp.bfloat16), w2.astype(jnp.bfloat16),
                preferred_element_type=jnp.float32) + b2
    return y.astype(x.dtype).reshape(b, n, dim)


if __name__ == "__main__":
    # Small shapes consistent with the module: x (batch, seq, dim).  Lane-dense
    # feature dims (multiples of 128); rows = 1024 so the default tm=512 gives
    # an even 2-step "parallel" grid (one step per v7x TensorCore) and no pad.
    B, N, DIM, HIDDEN = 4, 256, 128, 256

    key = jax.random.PRNGKey(0)
    kx, kw1, kb1, kw2, kb2 = jax.random.split(key, 5)

    x = jax.random.normal(kx, (B, N, DIM), dtype=jnp.float32)
    w1 = jax.random.normal(kw1, (DIM, HIDDEN), dtype=jnp.float32) * (DIM ** -0.5)
    b1 = jax.random.normal(kb1, (HIDDEN,), dtype=jnp.float32) * 0.02
    w2 = jax.random.normal(kw2, (HIDDEN, DIM), dtype=jnp.float32) * (HIDDEN ** -0.5)
    b2 = jax.random.normal(kb2, (DIM,), dtype=jnp.float32) * 0.02

    y = feedforward_forward(x, w1, b1, w2, b2)
    y = jax.block_until_ready(y)
    assert y.shape == (B, N, DIM)
    assert y.dtype == x.dtype

    # Tight structural check vs a reference using the identical bf16 recipe.
    y_ref_bf16 = feedforward_reference_bf16(x, w1, b1, w2, b2)
    assert jnp.allclose(y, y_ref_bf16, atol=2e-3, rtol=2e-3), \
        "mismatch vs bf16-matched reference"

    # Semantic check vs the pure f32 module forward (bf16 matmul tolerance).
    y_ref_f32 = feedforward_reference_f32(x, w1, b1, w2, b2)
    assert jnp.allclose(y, y_ref_f32, atol=5e-2, rtol=5e-2), \
        "mismatch vs f32 reference"

    print("KERNEL_OK")
</pallas_src>

<mosaic_0001>
module attributes {stable_mosaic.version = 11 : i64} {
  func.func @_ffn_kernel(%arg0: i32, %arg1: memref<512x128xf32, #tpu.memory_space<vmem>>, %arg2: memref<128x256xbf16, #tpu.memory_space<vmem>>, %arg3: memref<1x256xf32, #tpu.memory_space<vmem>>, %arg4: memref<256x128xbf16, #tpu.memory_space<vmem>>, %arg5: memref<1x128xf32, #tpu.memory_space<vmem>>, %arg6: memref<512x128xf32, #tpu.memory_space<vmem>>) attributes {dimension_semantics = [#tpu.dimension_semantics<parallel>], iteration_bounds = array<i64: 2>, scalar_prefetch = 0 : i64, scratch_operands = 0 : i64, tpu.core_type = #tpu.core_type<tc>, window_params = [{transform_indices = @transform_0, window_bounds = array<i64: 512, 128>}, {pipeline_mode = #tpu.pipeline_mode<synchronous>, transform_indices = @transform_1, window_bounds = array<i64: 128, 256>}, {pipeline_mode = #tpu.pipeline_mode<synchronous>, transform_indices = @transform_2, window_bounds = array<i64: 1, 256>}, {pipeline_mode = #tpu.pipeline_mode<synchronous>, transform_indices = @transform_3, window_bounds = array<i64: 256, 128>}, {pipeline_mode = #tpu.pipeline_mode<synchronous>, transform_indices = @transform_4, window_bounds = array<i64: 1, 128>}, {transform_indices = @transform_5, window_bounds = array<i64: 512, 128>}]} {
    %c0 = arith.constant 0 : index
    %c0_0 = arith.constant 0 : index
    %0 = vector.load %arg1[%c0, %c0_0] : memref<512x128xf32, #tpu.memory_space<vmem>>, vector<512x128xf32>
    %1 = arith.truncf %0 : vector<512x128xf32> to vector<512x128xbf16>
    %c0_1 = arith.constant 0 : index
    %c0_2 = arith.constant 0 : index
    %2 = vector.load %arg2[%c0_1, %c0_2] : memref<128x256xbf16, #tpu.memory_space<vmem>>, vector<128x256xbf16>
    %cst = arith.constant dense<0.000000e+00> : vector<512x256xf32>
    %3 = tpu.matmul %1, %2, %cst {dimension_numbers = #tpu.dot_dimension_numbers<[1], [0], [0], [1], [0, 0, 1, 1], [], []>} : vector<512x128xbf16>, vector<128x256xbf16>, vector<512x256xf32> -> vector<512x256xf32>
    %c0_3 = arith.constant 0 : index
    %c0_4 = arith.constant 0 : index
    %4 = vector.load %arg3[%c0_3, %c0_4] : memref<1x256xf32, #tpu.memory_space<vmem>>, vector<1x256xf32>
    %5 = vector.broadcast %4 : vector<1x256xf32> to vector<512x256xf32>
    %6 = arith.addf %3, %5 : vector<512x256xf32>
    %cst_5 = arith.constant 5.000000e-01 : f32
    %7 = vector.broadcast %cst_5 : f32 to vector<512x256xf32>
    %8 = arith.mulf %7, %6 : vector<512x256xf32>
    %cst_6 = arith.constant 0.797884583 : f32
    %9 = vector.broadcast %cst_6 : f32 to vector<512x256xf32>
    %10 = arith.mulf %9, %6 : vector<512x256xf32>
    %cst_7 = arith.constant 4.471500e-02 : f32
    %11 = vector.broadcast %cst_7 : f32 to vector<512x256xf32>
    %12 = arith.mulf %11, %6 : vector<512x256xf32>
    %13 = arith.mulf %12, %6 : vector<512x256xf32>
    %cst_8 = arith.constant 1.000000e+00 : f32
    %14 = vector.broadcast %cst_8 : f32 to vector<512x256xf32>
    %15 = arith.addf %14, %13 : vector<512x256xf32>
    %16 = arith.mulf %10, %15 : vector<512x256xf32>
    %17 = math.tanh %16 : vector<512x256xf32>
    %cst_9 = arith.constant 1.000000e+00 : f32
    %18 = vector.broadcast %cst_9 : f32 to vector<512x256xf32>
    %19 = arith.addf %18, %17 : vector<512x256xf32>
    %20 = arith.mulf %8, %19 : vector<512x256xf32>
    %21 = arith.truncf %20 : vector<512x256xf32> to vector<512x256xbf16>
    %c0_10 = arith.constant 0 : index
    %c0_11 = arith.constant 0 : index
    %22 = vector.load %arg4[%c0_10, %c0_11] : memref<256x128xbf16, #tpu.memory_space<vmem>>, vector<256x128xbf16>
    %cst_12 = arith.constant dense<0.000000e+00> : vector<512x128xf32>
    %23 = tpu.matmul %21, %22, %cst_12 {dimension_numbers = #tpu.dot_dimension_numbers<[1], [0], [0], [1], [0, 0, 1, 1], [], []>} : vector<512x256xbf16>, vector<256x128xbf16>, vector<512x128xf32> -> vector<512x128xf32>
    %c0_13 = arith.constant 0 : index
    %c0_14 = arith.constant 0 : index
    %24 = vector.load %arg5[%c0_13, %c0_14] : memref<1x128xf32, #tpu.memory_space<vmem>>, vector<1x128xf32>
    %25 = vector.broadcast %24 : vector<1x128xf32> to vector<512x128xf32>
    %26 = arith.addf %23, %25 : vector<512x128xf32>
    %c0_15 = arith.constant 0 : index
    %c0_16 = arith.constant 0 : index
    %27 = vector.load %arg6[%c0_15, %c0_16] : memref<512x128xf32, #tpu.memory_space<vmem>>, vector<512x128xf32>
    tpu.vector_store %arg6[%c0_15, %c0_16], %26 {strides = array<i32>} : memref<512x128xf32, #tpu.memory_space<vmem>>, vector<512x128xf32>,
    return
  }
  func.func @transform_0(%arg0: i32) -> (i32, i32) {
    %c0_i32 = arith.constant 0 : i32
    %c0_i32_0 = arith.constant 0 : i32
    return %arg0, %c0_i32 : i32, i32
  }
  func.func @transform_1(%arg0: i32) -> (i32, i32) {
    %c0_i32 = arith.constant 0 : i32
    %c0_i32_0 = arith.constant 0 : i32
    %c0_i32_1 = arith.constant 0 : i32
    return %c0_i32, %c0_i32_0 : i32, i32
  }
  func.func @transform_2(%arg0: i32) -> (i32, i32) {
    %c0_i32 = arith.constant 0 : i32
    %c0_i32_0 = arith.constant 0 : i32
    %c0_i32_1 = arith.constant 0 : i32
    return %c0_i32, %c0_i32_0 : i32, i32
  }
  func.func @transform_3(%arg0: i32) -> (i32, i32) {
    %c0_i32 = arith.constant 0 : i32
    %c0_i32_0 = arith.constant 0 : i32
    %c0_i32_1 = arith.constant 0 : i32
    return %c0_i32, %c0_i32_0 : i32, i32
  }
  func.func @transform_4(%arg0: i32) -> (i32, i32) {
    %c0_i32 = arith.constant 0 : i32
    %c0_i32_0 = arith.constant 0 : i32
    %c0_i32_1 = arith.constant 0 : i32
    return %c0_i32, %c0_i32_0 : i32, i32
  }
  func.func @transform_5(%arg0: i32) -> (i32, i32) {
    %c0_i32 = arith.constant 0 : i32
    %c0_i32_0 = arith.constant 0 : i32
    return %arg0, %c0_i32 : i32, i32
  }
}

</mosaic_0001>

<llo_original>
// kernel: tpu_custom_call.1
$region0: #{tpu_custom_call.1}
  #allocation0 [shape = 'u32[]', space=smem, size = 0x4, offset = 0x4, fixed_abs, tag = 'smem constant byte address 0x4 - core index']
  #allocation1 [shape = 'u32[144,128]{1,0:T(1,128)}', space=vmem, size = 0x12000, scoped, tag = 'internal scratch']
  %s0 = inlined_call_operand.hbm [shape: f32[1024,128], index: 0, kind: input, shape index: {}]
  %s1 = inlined_call_operand.hbm [shape: bf16[128,256], index: 1, kind: input, shape index: {}]
  %s2 = inlined_call_operand.vmem [shape: f32[1,256], index: 2, kind: input, shape index: {}]
  %s3 = inlined_call_operand.hbm [shape: bf16[256,128], index: 3, kind: input, shape index: {}]
  %s4 = inlined_call_operand.vmem [shape: f32[1,128], index: 4, kind: input, shape index: {}]
  %s5 = inlined_call_operand.hbm [shape: f32[1024,128], index: 5, kind: output, shape index: {}]
  %s6 = sld [smem:[#allocation0]]
  $region65: #{tpu_custom_call.1} parent=0
    _
  %s8 = ssub.s32 1, %s6
  %s9 = scalar_select 0, %s8, %s6
  $region1: #{tpu_custom_call.1} parent=0
    #allocation2 [shape = 'u8[524288]{0}', space=vmem, size = 0x80000, scoped, tag = 'input window, operand 0']
    #allocation3 [shape = 's32[2]{0}', space=sflag, size = 0x8, scoped, tag = 'scoped memory for tpu_custom_call.1']
    #allocation4 [shape = 's32[2]{0}', space=sflag, size = 0x8, scoped, tag = 'scoped memory for tpu_custom_call.1']
    #allocation5 [shape = 'u8[65536]{0}', space=vmem, size = 0x10000, scoped, tag = 'input window, operand 1, single buffered']
    #allocation6 [shape = 's32[1]{0}', space=sflag, size = 0x4, scoped, tag = 'scoped memory for tpu_custom_call.1']
    #allocation7 [shape = 'u8[65536]{0}', space=vmem, size = 0x10000, scoped, tag = 'input window, operand 3, single buffered']
    #allocation8 [shape = 'u8[524288]{0}', space=vmem, size = 0x80000, scoped, tag = 'output window, operand 0']
    %10 = vsyncpa [#allocation3], 0
    %s11 = scalar_lea.sflag [#allocation3], 1
    %12 = vsyncpa %s11, 0
    %13 = vsyncpa [#allocation6], 0
    %14 = vsyncpa [#allocation4], 0
    %s15 = scalar_lea.sflag [#allocation4], 1
    %16 = vsyncpa %s15, 0
    loop: start=0, step=1, limit=4
    $region2: #{tpu_custom_call.1} parent=1 // loop_pre_header
      _
    $region3: #{tpu_custom_call.1} parent=1 // loop_header
      %s18 = sphi 0, %s22
      %p19 = scmp.ge.s32.totalorder %s18, 4
      %s28 = sphi 0, %s30
      %s31 = sphi 0, %s28
      %s32 = sphi 0, %s31
      %s48 = sphi 0, %s32
      %s52 = sphi 0, %s52
      %s54 = sphi 0, %s52
      %s55 = sphi 0, %s54
      %s69 = sphi 0, %s55
      %s73 = sphi 0, %s73
      %s75 = sphi 0, %s73
      %s76 = sphi 0, %s75
      %s90 = sphi 0, %s76
      %s94 = sphi 0, %s94
      %s96 = sphi 0, %s94
      %s97 = sphi 0, %s96
      %s111 = sphi 0, %s97
      %s115 = sphi 0, %s115
      %s117 = sphi 0, %s115
      %s118 = sphi 0, %s117
      %s132 = sphi 0, %s118
      %s138 = sphi 0, %s140
      %s141 = sphi 0, %s138
      %s142 = sphi 0, %s141
      %s158 = sphi 0, %s142
    $region4: #{tpu_custom_call.1} parent=1 // loop_header_branch
      %21 = sbr.rel (%p19) target = $region8
    $region5: #{tpu_custom_call.1} parent=1 // loop_body
      %s23 = ssub.s32 %s18, 1
      %s24 = ssub.s32 %s18, 2
      %s25 = sadd.s32 %s18, 1
      %s26 = ssub.s32 %s18, %s25
      %p27 = scmp.eq.s32.totalorder %s26, 0
      %s29 = sadd.s32 %s28, 1
      %s30 = scalar_select %p27, %s28, %s29
      %p33 = pneg %p27
      %p34 = scmp.eq.s32.totalorder %s18, 1
      %p35 = por %p33, %p34
      %p36 = scmp.ne.s32.totalorder %s28, %s31
      %p37 = scmp.eq.s32.totalorder %s18, 0
      %p38 = por %p36, %p37
      %p39 = scmp.ne.s32.totalorder %s28, %s31
      %p40 = scmp.eq.s32.totalorder %s23, 1
      %p41 = por %p39, %p40
      %p42 = scmp.ne.s32.totalorder %s31, %s32
      %p43 = scmp.eq.s32.totalorder %s23, 0
      %p44 = por %p42, %p43
      %p45 = scmp.ne.s32.totalorder %s31, %s32
      %p46 = scmp.eq.s32.totalorder %s24, 1
      %p47 = por %p45, %p46
      %p49 = scmp.ne.s32.totalorder %s32, %s48
      %p50 = scmp.eq.s32.totalorder %s24, 0
      %p51 = por %p49, %p50
      %s53 = sadd.s32 %s52, 1
      %p56 = scmp.eq.s32.totalorder %s18, 1
      %p57 = scmp.ne.s32.totalorder %s52, %s54
      %p58 = scmp.eq.s32.totalorder %s18, 0
      %p59 = por %p57, %p58
      %p60 = scmp.ne.s32.totalorder %s52, %s54
      %p61 = scmp.eq.s32.totalorder %s23, 1
      %p62 = por %p60, %p61
      %p63 = scmp.ne.s32.totalorder %s54, %s55
      %p64 = scmp.eq.s32.totalorder %s23, 0
      %p65 = por %p63, %p64
      %p66 = scmp.ne.s32.totalorder %s54, %s55
      %p67 = scmp.eq.s32.totalorder %s24, 1
      %p68 = por %p66, %p67
      %p70 = scmp.ne.s32.totalorder %s55, %s69
      %p71 = scmp.eq.s32.totalorder %s24, 0
      %p72 = por %p70, %p71
      %s74 = sadd.s32 %s73, 1
      %p77 = scmp.eq.s32.totalorder %s18, 1
      %p78 = scmp.ne.s32.totalorder %s73, %s75
      %p79 = scmp.eq.s32.totalorder %s18, 0
      %p80 = por %p78, %p79
      %p81 = scmp.ne.s32.totalorder %s73, %s75
      %p82 = scmp.eq.s32.totalorder %s23, 1
      %p83 = por %p81, %p82
      %p84 = scmp.ne.s32.totalorder %s75, %s76
      %p85 = scmp.eq.s32.totalorder %s23, 0
      %p86 = por %p84, %p85
      %p87 = scmp.ne.s32.totalorder %s75, %s76
      %p88 = scmp.eq.s32.totalorder %s24, 1
      %p89 = por %p87, %p88
      %p91 = scmp.ne.s32.totalorder %s76, %s90
      %p92 = scmp.eq.s32.totalorder %s24, 0
      %p93 = por %p91, %p92
      %s95 = sadd.s32 %s94, 1
      %p98 = scmp.eq.s32.totalorder %s18, 1
      %p99 = scmp.ne.s32.totalorder %s94, %s96
      %p100 = scmp.eq.s32.totalorder %s18, 0
      %p101 = por %p99, %p100
      %p102 = scmp.ne.s32.totalorder %s94, %s96
      %p103 = scmp.eq.s32.totalorder %s23, 1
      %p104 = por %p102, %p103
      %p105 = scmp.ne.s32.totalorder %s96, %s97
      %p106 = scmp.eq.s32.totalorder %s23, 0
      %p107 = por %p105, %p106
      %p108 = scmp.ne.s32.totalorder %s96, %s97
      %p109 = scmp.eq.s32.totalorder %s24, 1
      %p110 = por %p108, %p109
      %p112 = scmp.ne.s32.totalorder %s97, %s111
      %p113 = scmp.eq.s32.totalorder %s24, 0
      %p114 = por %p112, %p113
      %s116 = sadd.s32 %s115, 1
      %p119 = scmp.eq.s32.totalorder %s18, 1
      %p120 = scmp.ne.s32.totalorder %s115, %s117
      %p121 = scmp.eq.s32.totalorder %s18, 0
      %p122 = por %p120, %p121
      %p123 = scmp.ne.s32.totalorder %s115, %s117
      %p124 = scmp.eq.s32.totalorder %s23, 1
      %p125 = por %p123, %p124
      %p126 = scmp.ne.s32.totalorder %s117, %s118
      %p127 = scmp.eq.s32.totalorder %s23, 0
      %p128 = por %p126, %p127
      %p129 = scmp.ne.s32.totalorder %s117, %s118
      %p130 = scmp.eq.s32.totalorder %s24, 1
      %p131 = por %p129, %p130
      %p133 = scmp.ne.s32.totalorder %s118, %s132
      %p134 = scmp.eq.s32.totalorder %s24, 0
      %p135 = por %p133, %p134
      %s136 = ssub.s32 %s18, %s25
      %p137 = scmp.eq.s32.totalorder %s136, 0
      %s139 = sadd.s32 %s138, 1
      %s140 = scalar_select %p137, %s138, %s139
      %p143 = pneg %p137
      %p144 = scmp.eq.s32.totalorder %s18, 1
      %p145 = por %p143, %p144
      %p146 = scmp.ne.s32.totalorder %s138, %s141
      %p147 = scmp.eq.s32.totalorder %s18, 0
      %p148 = por %p146, %p147
      %p149 = scmp.ne.s32.totalorder %s138, %s141
      %p150 = scmp.eq.s32.totalorder %s23, 1
      %p151 = por %p149, %p150
      %p152 = scmp.ne.s32.totalorder %s141, %s142
      %p153 = scmp.eq.s32.totalorder %s23, 0
      %p154 = por %p152, %p153
      %p155 = scmp.ne.s32.totalorder %s141, %s142
      %p156 = scmp.eq.s32.totalorder %s24, 1
      %p157 = por %p155, %p156
      %p159 = scmp.ne.s32.totalorder %s142, %s158
      %p160 = scmp.eq.s32.totalorder %s24, 0
      %p161 = por %p159, %p160
      %p162 = scmp.le.s32.totalorder 1, %s18
      %p163 = scmp.lt.s32.totalorder %s18, 3
      %p164 = pnand %p162, %p163
      %p165 = pneg %p164
      // Predicated region
      $region9: #{tpu_custom_call.1} parent=5 // pred_check
        _
      $region10: #{tpu_custom_call.1} parent=5 // pred_check_branch
        %167 = sbr.rel (%p164) target = $region12
      $region11: #{tpu_custom_call.1} parent=5 // pred_region
        %s168 = ssub.s32 %s18, 1
        // Predicated region
        $region13: #{tpu_custom_call.1} parent=11 // pred_check
          %p169 = pneg %p65
        $region14: #{tpu_custom_call.1} parent=11 // pred_check_branch
          %171 = sbr.rel (%p169) target = $region16
        $region15: #{tpu_custom_call.1} parent=11 // pred_region
          %s173 = ssub.s32 2048, 2048
          %174 = vsyncadd [#allocation6], %s173
          %s175 = sshll.u32 [#allocation5], 4
          %s176 = int_to_ptr.vmem [resolvable:$true] %s175
          %181 = dma.hbm_to_vmem [thread:$0]  %s1, 2048, %s176, [#allocation6], 128, 128, 8
        $region16: #{tpu_custom_call.1} parent=11 // pred_fallthru
          _
        // Predicated region
        $region17: #{tpu_custom_call.1} parent=11 // pred_check
          %p182 = pneg %p86
        $region18: #{tpu_custom_call.1} parent=11 // pred_check_branch
          %184 = sbr.rel (%p182) target = $region20
        $region19: #{tpu_custom_call.1} parent=11 // pred_region
          _
        $region20: #{tpu_custom_call.1} parent=11 // pred_fallthru
          _
        // Predicated region
        $region21: #{tpu_custom_call.1} parent=11 // pred_check
          %p185 = pneg %p107
        $region22: #{tpu_custom_call.1} parent=11 // pred_check_branch
          %187 = sbr.rel (%p185) target = $region24
        $region23: #{tpu_custom_call.1} parent=11 // pred_region
          %s189 = ssub.s32 2048, 2048
          %190 = vsyncadd [#allocation6], %s189
          %s191 = sshll.u32 [#allocation7], 4
          %s192 = int_to_ptr.vmem [resolvable:$true] %s191
          %197 = dma.hbm_to_vmem [thread:$0]  %s3, 2048, %s192, [#allocation6], 64, 64, 4
        $region24: #{tpu_custom_call.1} parent=11 // pred_fallthru
          _
        // Predicated region
        $region25: #{tpu_custom_call.1} parent=11 // pred_check
          %p198 = pneg %p128
        $region26: #{tpu_custom_call.1} parent=11 // pred_check_branch
          %200 = sbr.rel (%p198) target = $region28
        $region27: #{tpu_custom_call.1} parent=11 // pred_region
          _
        $region28: #{tpu_custom_call.1} parent=11 // pred_fallthru
          _
      $region12: #{tpu_custom_call.1} parent=5 // pred_fallthru
        _
      %p201 = scmp.lt.s32.totalorder %s18, 2
      // Predicated region
      $region29: #{tpu_custom_call.1} parent=5 // pred_check
        %p202 = pneg %p201
      $region30: #{tpu_custom_call.1} parent=5 // pred_check_branch
        %204 = sbr.rel (%p202) target = $region32
      $region31: #{tpu_custom_call.1} parent=5 // pred_region
        // Predicated region
        $region33: #{tpu_custom_call.1} parent=31 // pred_check
          %p205 = pneg %p38
        $region34: #{tpu_custom_call.1} parent=31 // pred_check_branch
          %207 = sbr.rel (%p205) target = $region36
        $region35: #{tpu_custom_call.1} parent=31 // pred_region
          %s208 = sand.u32 %s28, 1
          %s209 = scalar_lea.sflag [#allocation3], %s208
          %s210 = sand.u32 %s28, 1
          %s211 = smul.addr %s210, 512
          %s212 = scalar_lea.vmem [#allocation2], %s211
          %s213 = smul.u32 64, %s18
          %s215 = ssub.s32 8192, 8192
          %216 = vsyncadd %s209, %s215
          %s217 = smul.addr %s213, 128
          %s218 = scalar_lea.hbm %s0, %s217
          %s219 = sshll.u32 %s212, 4
          %s220 = int_to_ptr.vmem [resolvable:$true] %s219
          %225 = dma.hbm_to_vmem [thread:$0]  %s218, 8192, %s220, %s209, 128, 128, 8
        $region36: #{tpu_custom_call.1} parent=31 // pred_fallthru
          _
      $region32: #{tpu_custom_call.1} parent=5 // pred_fallthru
        _
      %p226 = scmp.le.s32.totalorder 1, %s18
      %p227 = scmp.lt.s32.totalorder %s18, 3
      %p228 = pnand %p226, %p227
      %p229 = pneg %p228
      // Predicated region
      $region37: #{tpu_custom_call.1} parent=5 // pred_check
        _
      $region38: #{tpu_custom_call.1} parent=5 // pred_check_branch
        %231 = sbr.rel (%p228) target = $region40
      $region39: #{tpu_custom_call.1} parent=5 // pred_region
        %s232 = ssub.s32 %s18, 1
        %s233 = sand.u32 %s31, 1
        %s234 = scalar_lea.sflag [#allocation3], %s233
        %s235 = sand.u32 %s31, 1
        %s236 = smul.addr %s235, 512
        %s237 = scalar_lea.vmem [#allocation2], %s236
        // Predicated region
        $region41: #{tpu_custom_call.1} parent=39 // pred_check
          %p238 = pneg %p44
        $region42: #{tpu_custom_call.1} parent=39 // pred_check_branch
          %240 = sbr.rel (%p238) target = $region44
        $region43: #{tpu_custom_call.1} parent=39 // pred_region
          %241 = dma.done %s234, 8192
        $region44: #{tpu_custom_call.1} parent=39 // pred_fallthru
          _
        // Predicated region
        $region45: #{tpu_custom_call.1} parent=39 // pred_check
          %p242 = pneg %p65
        $region46: #{tpu_custom_call.1} parent=39 // pred_check_branch
          %244 = sbr.rel (%p242) target = $region48
        $region47: #{tpu_custom_call.1} parent=39 // pred_region
          %245 = dma.done [#allocation6], 2048
        $region48: #{tpu_custom_call.1} parent=39 // pred_fallthru
          _
        // Predicated region
        $region49: #{tpu_custom_call.1} parent=39 // pred_check
          %p246 = pneg %p107
        $region50: #{tpu_custom_call.1} parent=39 // pred_check_branch
          %248 = sbr.rel (%p246) target = $region52
        $region51: #{tpu_custom_call.1} parent=39 // pred_region
          %249 = dma.done [#allocation6], 2048
        $region52: #{tpu_custom_call.1} parent=39 // pred_fallthru
          _
        %s250 = sand.u32 %s31, 1
        %s251 = scalar_lea.sflag [#allocation3], %s250
        %s252 = sand.u32 %s31, 1
        %s253 = smul.addr %s252, 512
        %s254 = scalar_lea.vmem [#allocation2], %s253
        %p255 = pneg %p44
        %p256 = pneg %p41
        %p257 = pneg %p65
        %p258 = pneg %p62
        %p259 = pneg %p86
        %p260 = pneg %p83
        %p261 = pneg %p107
        %p262 = pneg %p104
        %p263 = pneg %p128
        %p264 = pneg %p125
        %p265 = pneg %p154
        %p266 = pneg %p151
        %s267 = sand.u32 %s141, 1
        %s268 = scalar_lea.sflag [#allocation4], %s267
        %s269 = sand.u32 %s141, 1
        %s270 = smul.addr %s269, 512
        %s271 = scalar_lea.vmem [#allocation8], %s270
        %s272 = smul.u32 64, %s23
        %s273 = smul.u32 64, %s23
        %v275 = vld [vmem:[%s237] sm:$0xff]
        %v276 = vld [vmem:[%s237 + $0x8] sm:$0xff]
        %v277 = vld [vmem:[%s237 + $0x10] sm:$0xff]
        %v278 = vld [vmem:[%s237 + $0x18] sm:$0xff]
        %v279 = vld [vmem:[%s237 + $0x20] sm:$0xff]
        %v280 = vld [vmem:[%s237 + $0x28] sm:$0xff]
        %v281 = vld [vmem:[%s237 + $0x30] sm:$0xff]
        %v282 = vld [vmem:[%s237 + $0x38] sm:$0xff]
        %v283 = vld [vmem:[%s237 + $0x40] sm:$0xff]
        %v284 = vld [vmem:[%s237 + $0x48] sm:$0xff]
        %v285 = vld [vmem:[%s237 + $0x50] sm:$0xff]
        %v286 = vld [vmem:[%s237 + $0x58] sm:$0xff]
        %v287 = vld [vmem:[%s237 + $0x60] sm:$0xff]
        %v288 = vld [vmem:[%s237 + $0x68] sm:$0xff]
        %v289 = vld [vmem:[%s237 + $0x70] sm:$0xff]
        %v290 = vld [vmem:[%s237 + $0x78] sm:$0xff]
        %v291 = vld [vmem:[%s237 + $0x80] sm:$0xff]
        %v292 = vld [vmem:[%s237 + $0x88] sm:$0xff]
        %v293 = vld [vmem:[%s237 + $0x90] sm:$0xff]
        %v294 = vld [vmem:[%s237 + $0x98] sm:$0xff]
        %v295 = vld [vmem:[%s237 + $0xa0] sm:$0xff]
        %v296 = vld [vmem:[%s237 + $0xa8] sm:$0xff]
        %v297 = vld [vmem:[%s237 + $0xb0] sm:$0xff]
        %v298 = vld [vmem:[%s237 + $0xb8] sm:$0xff]
        %v299 = vld [vmem:[%s237 + $0xc0] sm:$0xff]
        %v300 = vld [vmem:[%s237 + $0xc8] sm:$0xff]
        %v301 = vld [vmem:[%s237 + $0xd0] sm:$0xff]
        %v302 = vld [vmem:[%s237 + $0xd8] sm:$0xff]
        %v303 = vld [vmem:[%s237 + $0xe0] sm:$0xff]
        %v304 = vld [vmem:[%s237 + $0xe8] sm:$0xff]
        %v305 = vld [vmem:[%s237 + $0xf0] sm:$0xff]
        %v306 = vld [vmem:[%s237 + $0xf8] sm:$0xff]
        %v307 = vld [vmem:[%s237 + $0x100] sm:$0xff]
        %v308 = vld [vmem:[%s237 + $0x108] sm:$0xff]
        %v309 = vld [vmem:[%s237 + $0x110] sm:$0xff]
        %v310 = vld [vmem:[%s237 + $0x118] sm:$0xff]
        %v311 = vld [vmem:[%s237 + $0x120] sm:$0xff]
        %v312 = vld [vmem:[%s237 + $0x128] sm:$0xff]
        %v313 = vld [vmem:[%s237 + $0x130] sm:$0xff]
        %v314 = vld [vmem:[%s237 + $0x138] sm:$0xff]
        %v315 = vld [vmem:[%s237 + $0x140] sm:$0xff]
        %v316 = vld [vmem:[%s237 + $0x148] sm:$0xff]
        %v317 = vld [vmem:[%s237 + $0x150] sm:$0xff]
        %v318 = vld [vmem:[%s237 + $0x158] sm:$0xff]
        %v319 = vld [vmem:[%s237 + $0x160] sm:$0xff]
        %v320 = vld [vmem:[%s237 + $0x168] sm:$0xff]
        %v321 = vld [vmem:[%s237 + $0x170] sm:$0xff]
        %v322 = vld [vmem:[%s237 + $0x178] sm:$0xff]
        %v323 = vld [vmem:[%s237 + $0x180] sm:$0xff]
        %v324 = vld [vmem:[%s237 + $0x188] sm:$0xff]
        %v325 = vld [vmem:[%s237 + $0x190] sm:$0xff]
        %v326 = vld [vmem:[%s237 + $0x198] sm:$0xff]
        %v327 = vld [vmem:[%s237 + $0x1a0] sm:$0xff]
        %v328 = vld [vmem:[%s237 + $0x1a8] sm:$0xff]
        %v329 = vld [vmem:[%s237 + $0x1b0] sm:$0xff]
        %v330 = vld [vmem:[%s237 + $0x1b8] sm:$0xff]
        %v331 = vld [vmem:[%s237 + $0x1c0] sm:$0xff]
        %v332 = vld [vmem:[%s237 + $0x1c8] sm:$0xff]
        %v333 = vld [vmem:[%s237 + $0x1d0] sm:$0xff]
        %v334 = vld [vmem:[%s237 + $0x1d8] sm:$0xff]
        %v335 = vld [vmem:[%s237 + $0x1e0] sm:$0xff]
        %v336 = vld [vmem:[%s237 + $0x1e8] sm:$0xff]
        %v337 = vld [vmem:[%s237 + $0x1f0] sm:$0xff]
        %v338 = vld [vmem:[%s237 + $0x1f8] sm:$0xff]
        %v339 = vpack.c.bf16 %v276, %v275
        %v340 = vpack.c.bf16 %v278, %v277
        %v341 = vpack.c.bf16 %v280, %v279
        %v342 = vpack.c.bf16 %v282, %v281
        %v343 = vpack.c.bf16 %v284, %v283
        %v344 = vpack.c.bf16 %v286, %v285
        %v345 = vpack.c.bf16 %v288, %v287
        %v346 = vpack.c.bf16 %v290, %v289
        %v347 = vpack.c.bf16 %v292, %v291
        %v348 = vpack.c.bf16 %v294, %v293
        %v349 = vpack.c.bf16 %v296, %v295
        %v350 = vpack.c.bf16 %v298, %v297
        %v351 = vpack.c.bf16 %v300, %v299
        %v352 = vpack.c.bf16 %v302, %v301
        %v353 = vpack.c.bf16 %v304, %v303
        %v354 = vpack.c.bf16 %v306, %v305
        %v355 = vpack.c.bf16 %v308, %v307
        %v356 = vpack.c.bf16 %v310, %v309
        %v357 = vpack.c.bf16 %v312, %v311
        %v358 = vpack.c.bf16 %v314, %v313
        %v359 = vpack.c.bf16 %v316, %v315
        %v360 = vpack.c.bf16 %v318, %v317
        %v361 = vpack.c.bf16 %v320, %v319
        %v362 = vpack.c.bf16 %v322, %v321
        %v363 = vpack.c.bf16 %v324, %v323
        %v364 = vpack.c.bf16 %v326, %v325
        %v365 = vpack.c.bf16 %v328, %v327
        %v366 = vpack.c.bf16 %v330, %v329
        %v367 = vpack.c.bf16 %v332, %v331
        %v368 = vpack.c.bf16 %v334, %v333
        %v369 = vpack.c.bf16 %v336, %v335
        %v370 = vpack.c.bf16 %v338, %v337
        %v371 = vld [vmem:[#allocation5] sm:$0xff]
        %v372 = vld [vmem:[#allocation5 + $0x8] sm:$0xff]
        %v373 = vld [vmem:[#allocation5 + $0x10] sm:$0xff]
        %v374 = vld [vmem:[#allocation5 + $0x18] sm:$0xff]
        %v375 = vld [vmem:[#allocation5 + $0x20] sm:$0xff]
        %v376 = vld [vmem:[#allocation5 + $0x28] sm:$0xff]
        %v377 = vld [vmem:[#allocation5 + $0x30] sm:$0xff]
        %v378 = vld [vmem:[#allocation5 + $0x38] sm:$0xff]
        %v379 = vld [vmem:[#allocation5 + $0x40] sm:$0xff]
        %v380 = vld [vmem:[#allocation5 + $0x48] sm:$0xff]
        %v381 = vld [vmem:[#allocation5 + $0x50] sm:$0xff]
        %v382 = vld [vmem:[#allocation5 + $0x58] sm:$0xff]
        %v383 = vld [vmem:[#allocation5 + $0x60] sm:$0xff]
        %v384 = vld [vmem:[#allocation5 + $0x68] sm:$0xff]
        %v385 = vld [vmem:[#allocation5 + $0x70] sm:$0xff]
        %v386 = vld [vmem:[#allocation5 + $0x78] sm:$0xff]
        %v387 = vld [vmem:[%s2] sm:$0x3]
        %v389 = vlaneseq
        %v390 = vshrl.u32 %v389, 7
        %v391 = vsub.s32 0, %v390
        %v392 = vrot.slane %v387, %v391
        %v393 = vlaneseq
        %v394 = vshrl.u32 %v393, 7
        %v395 = vsub.s32 1, %v394
        %v396 = vrot.slane %v387, %v395
        %v415 = vunpack.c.l.b16 %v371
        %v416 = vunpack.c.h.b16 %v371
        %v417 = vunpack.c.l.b16 %v372
        %v418 = vunpack.c.h.b16 %v372
        %v419 = vunpack.c.l.b16 %v373
        %v420 = vunpack.c.h.b16 %v373
        %v421 = vunpack.c.l.b16 %v374
        %v422 = vunpack.c.h.b16 %v374
        %v423 = vunpack.c.l.b16 %v375
        %v424 = vunpack.c.h.b16 %v375
        %v425 = vunpack.c.l.b16 %v376
        %v426 = vunpack.c.h.b16 %v376
        %v427 = vunpack.c.l.b16 %v377
        %v428 = vunpack.c.h.b16 %v377
        %v429 = vunpack.c.l.b16 %v378
        %v430 = vunpack.c.h.b16 %v378
        %v431 = vunpack.c.l.b16 %v379
        %v432 = vunpack.c.h.b16 %v379
        %v433 = vunpack.c.l.b16 %v380
        %v434 = vunpack.c.h.b16 %v380
        %v435 = vunpack.c.l.b16 %v381
        %v436 = vunpack.c.h.b16 %v381
        %v437 = vunpack.c.l.b16 %v382
        %v438 = vunpack.c.h.b16 %v382
        %v439 = vunpack.c.l.b16 %v383
        %v440 = vunpack.c.h.b16 %v383
        %v441 = vunpack.c.l.b16 %v384
        %v442 = vunpack.c.h.b16 %v384
        %v443 = vunpack.c.l.b16 %v385
        %v444 = vunpack.c.h.b16 %v385
        %v445 = vunpack.c.l.b16 %v386
        %v446 = vunpack.c.h.b16 %v386
        %v447 = vpack.c.b16 %v417, %v415
        %v448 = vpack.c.b16 %v418, %v416
        %v449 = vpack.c.b16 %v421, %v419
        %v450 = vpack.c.b16 %v422, %v420
        %v451 = vpack.c.b16 %v425, %v423
        %v452 = vpack.c.b16 %v426, %v424
        %v453 = vpack.c.b16 %v429, %v427
        %v454 = vpack.c.b16 %v430, %v428
        %v455 = vpack.c.b16 %v433, %v431
        %v456 = vpack.c.b16 %v434, %v432
        %v457 = vpack.c.b16 %v437, %v435
        %v458 = vpack.c.b16 %v438, %v436
        %v459 = vpack.c.b16 %v441, %v439
        %v460 = vpack.c.b16 %v442, %v440
        %v461 = vpack.c.b16 %v445, %v443
        %v462 = vpack.c.b16 %v446, %v444
        %479 = vmatprep.subr.bf16.mxu0 %v448
        %480 = vmatpush1.bf16.msra.mxu0 %v447
        %481 = vmatprep.subr.bf16.mxu0 %v450
        %482 = vmatpush1.bf16.msra.mxu0 %v449
        %483 = vmatprep.subr.bf16.mxu0 %v452
        %484 = vmatpush1.bf16.msra.mxu0 %v451
        %485 = vmatprep.subr.bf16.mxu0 %v454
        %486 = vmatpush1.bf16.msra.mxu0 %v453
        %487 = vmatprep.subr.bf16.mxu0 %v456
        %488 = vmatpush1.bf16.msra.mxu0 %v455
        %489 = vmatprep.subr.bf16.mxu0 %v458
        %490 = vmatpush1.bf16.msra.mxu0 %v457
        %491 = vmatprep.subr.bf16.mxu0 %v460
        %492 = vmatpush1.bf16.msra.mxu0 %v459
        %493 = vmatprep.subr.bf16.mxu0 %v462
        %494 = vmatpush1.bf16.msra.mxu0 %v461
        %495 = vmatprep.subr.bf16.mxu0 0
        %496 = vmatpush1.bf16.msra.mxu0 0
        %497 = vmatprep.subr.bf16.mxu0 0
        %498 = vmatpush1.bf16.msra.mxu0 0
        %499 = vmatprep.subr.bf16.mxu0 0
        %500 = vmatpush1.bf16.msra.mxu0 0
        %501 = vmatprep.subr.bf16.mxu0 0
        %502 = vmatpush1.bf16.msra.mxu0 0
        %503 = vmatprep.subr.bf16.mxu0 0
        %504 = vmatpush1.bf16.msra.mxu0 0
        %505 = vmatprep.subr.bf16.mxu0 0
        %506 = vmatpush1.bf16.msra.mxu0 0
        %507 = vmatprep.subr.bf16.mxu0 0
        %508 = vmatpush1.bf16.msra.mxu0 0
        %509 = vmatprep.subr.bf16.mxu0 0
        %510 = vmatpush1.bf16.msra.mxu0 0
        %511 = vmatprep.mubr.bf16.mxu0 0
        %512 = vmatmul.mubr.bf16.gmra.mrb[0].mxu0 %v339
        %v513 = vpop.f32.mrb[0].mxu0
        %v514 = vadd.f32 %v392, %v513
        %v515 = vpop.f32.mrb[0].mxu0
        %v516 = vadd.f32 %v396, %v515
        %v517 = vpop.f32.mrb[0].mxu0
        %v518 = vadd.f32 %v392, %v517
        %v519 = vpop.f32.mrb[0].mxu0
        %v520 = vadd.f32 %v396, %v519
        %521 = vmatprep.mubr.bf16.mxu0 0
        %522 = vmatmul.mubr.bf16.gmra.mrb[0].mxu0 %v340
        %v523 = vpop.f32.mrb[0].mxu0
        %v524 = vadd.f32 %v392, %v523
        %v525 = vpop.f32.mrb[0].mxu0
        %v526 = vadd.f32 %v396, %v525
        %v527 = vpop.f32.mrb[0].mxu0
        %v528 = vadd.f32 %v392, %v527
        %v529 = vpop.f32.mrb[0].mxu0
        %v530 = vadd.f32 %v396, %v529
        %531 = vmatprep.mubr.bf16.mxu0 0
        %532 = vmatmul.mubr.bf16.gmra.mrb[0].mxu0 %v341
        %v533 = vpop.f32.mrb[0].mxu0
        %v534 = vadd.f32 %v392, %v533
        %v535 = vpop.f32.mrb[0].mxu0
        %v536 = vadd.f32 %v396, %v535
        %v537 = vpop.f32.mrb[0].mxu0
        %v538 = vadd.f32 %v392, %v537
        %v539 = vpop.f32.mrb[0].mxu0
        %v540 = vadd.f32 %v396, %v539
        %541 = vmatprep.mubr.bf16.mxu0 0
        %542 = vmatmul.mubr.bf16.gmra.mrb[0].mxu0 %v342
        %v543 = vpop.f32.mrb[0].mxu0
        %v544 = vadd.f32 %v392, %v543
        %v545 = vpop.f32.mrb[0].mxu0
        %v546 = vadd.f32 %v396, %v545
        %v547 = vpop.f32.mrb[0].mxu0
        %v548 = vadd.f32 %v392, %v547
        %v549 = vpop.f32.mrb[0].mxu0
        %v550 = vadd.f32 %v396, %v549
        %551 = vmatprep.mubr.bf16.mxu0 0
        %552 = vmatmul.mubr.bf16.gmra.mrb[0].mxu0 %v343
        %v553 = vpop.f32.mrb[0].mxu0
        %v554 = vadd.f32 %v392, %v553
        %v555 = vpop.f32.mrb[0].mxu0
        %v556 = vadd.f32 %v396, %v555
        %v557 = vpop.f32.mrb[0].mxu0
        %v558 = vadd.f32 %v392, %v557
        %v559 = vpop.f32.mrb[0].mxu0
        %v560 = vadd.f32 %v396, %v559
        %561 = vmatprep.mubr.bf16.mxu0 0
        %562 = vmatmul.mubr.bf16.gmra.mrb[0].mxu0 %v344
        %v563 = vpop.f32.mrb[0].mxu0
        %v564 = vadd.f32 %v392, %v563
        %v565 = vpop.f32.mrb[0].mxu0
        %v566 = vadd.f32 %v396, %v565
        %v567 = vpop.f32.mrb[0].mxu0
        %v568 = vadd.f32 %v392, %v567
        %v569 = vpop.f32.mrb[0].mxu0
        %v570 = vadd.f32 %v396, %v569
        %571 = vmatprep.mubr.bf16.mxu0 0
        %572 = vmatmul.mubr.bf16.gmra.mrb[0].mxu0 %v345
        %v573 = vpop.f32.mrb[0].mxu0
        %v574 = vadd.f32 %v392, %v573
        %v575 = vpop.f32.mrb[0].mxu0
        %v576 = vadd.f32 %v396, %v575
        %v577 = vpop.f32.mrb[0].mxu0
        %v578 = vadd.f32 %v392, %v577
        %v579 = vpop.f32.mrb[0].mxu0
        %v580 = vadd.f32 %v396, %v579
        %581 = vmatprep.mubr.bf16.mxu0 0
        %582 = vmatmul.mubr.bf16.gmra.mrb[0].mxu0 %v346
        %v583 = vpop.f32.mrb[0].mxu0
        %v584 = vadd.f32 %v392, %v583
        %v585 = vpop.f32.mrb[0].mxu0
        %v586 = vadd.f32 %v396, %v585
        %v587 = vpop.f32.mrb[0].mxu0
        %v588 = vadd.f32 %v392, %v587
        %v589 = vpop.f32.mrb[0].mxu0
        %v590 = vadd.f32 %v396, %v589
        %591 = vmatprep.mubr.bf16.mxu0 0
        %592 = vmatmul.mubr.bf16.gmra.mrb[0].mxu0 %v347
        %v593 = vpop.f32.mrb[0].mxu0
        %v594 = vadd.f32 %v392, %v593
        %v595 = vpop.f32.mrb[0].mxu0
        %v596 = vadd.f32 %v396, %v595
        %v597 = vpop.f32.mrb[0].mxu0
        %v598 = vadd.f32 %v392, %v597
        %v599 = vpop.f32.mrb[0].mxu0
        %v600 = vadd.f32 %v396, %v599
        %601 = vmatprep.mubr.bf16.mxu0 0
        %602 = vmatmul.mubr.bf16.gmra.mrb[0].mxu0 %v348
        %v603 = vpop.f32.mrb[0].mxu0
        %v604 = vadd.f32 %v392, %v603
        %v605 = vpop.f32.mrb[0].mxu0
        %v606 = vadd.f32 %v396, %v605
        %v607 = vpop.f32.mrb[0].mxu0
        %v608 = vadd.f32 %v392, %v607
        %v609 = vpop.f32.mrb[0].mxu0
        %v610 = vadd.f32 %v396, %v609
        %611 = vmatprep.mubr.bf16.mxu0 0
        %612 = vmatmul.mubr.bf16.gmra.mrb[0].mxu0 %v349
        %v613 = vpop.f32.mrb[0].mxu0
        %v614 = vadd.f32 %v392, %v613
        %v615 = vpop.f32.mrb[0].mxu0
        %v616 = vadd.f32 %v396, %v615
        %v617 = vpop.f32.mrb[0].mxu0
        %v618 = vadd.f32 %v392, %v617
        %v619 = vpop.f32.mrb[0].mxu0
        %v620 = vadd.f32 %v396, %v619
        %621 = vmatprep.mubr.bf16.mxu0 0
        %622 = vmatmul.mubr.bf16.gmra.mrb[0].mxu0 %v350
        %v623 = vpop.f32.mrb[0].mxu0
        %v624 = vadd.f32 %v392, %v623
        %v625 = vpop.f32.mrb[0].mxu0
        %v626 = vadd.f32 %v396, %v625
        %v627 = vpop.f32.mrb[0].mxu0
        %v628 = vadd.f32 %v392, %v627
        %v629 = vpop.f32.mrb[0].mxu0
        %v630 = vadd.f32 %v396, %v629
        %631 = vmatprep.mubr.bf16.mxu0 0
        %632 = vmatmul.mubr.bf16.gmra.mrb[0].mxu0 %v351
        %v633 = vpop.f32.mrb[0].mxu0
        %v634 = vadd.f32 %v392, %v633
        %v635 = vpop.f32.mrb[0].mxu0
        %v636 = vadd.f32 %v396, %v635
        %v637 = vpop.f32.mrb[0].mxu0
        %v638 = vadd.f32 %v392, %v637
        %v639 = vpop.f32.mrb[0].mxu0
        %v640 = vadd.f32 %v396, %v639
        %641 = vmatprep.mubr.bf16.mxu0 0
        %642 = vmatmul.mubr.bf16.gmra.mrb[0].mxu0 %v352
        %v643 = vpop.f32.mrb[0].mxu0
        %v644 = vadd.f32 %v392, %v643
        %v645 = vpop.f32.mrb[0].mxu0
        %v646 = vadd.f32 %v396, %v645
        %v647 = vpop.f32.mrb[0].mxu0
        %v648 = vadd.f32 %v392, %v647
        %v649 = vpop.f32.mrb[0].mxu0
        %v650 = vadd.f32 %v396, %v649
        %651 = vmatprep.mubr.bf16.mxu0 0
        %652 = vmatmul.mubr.bf16.gmra.mrb[0].mxu0 %v353
        %v653 = vpop.f32.mrb[0].mxu0
        %v654 = vadd.f32 %v392, %v653
        %v655 = vpop.f32.mrb[0].mxu0
        %v656 = vadd.f32 %v396, %v655
        %v657 = vpop.f32.mrb[0].mxu0
        %v658 = vadd.f32 %v392, %v657
        %v659 = vpop.f32.mrb[0].mxu0
        %v660 = vadd.f32 %v396, %v659
        %661 = vmatprep.mubr.bf16.mxu0 0
        %662 = vmatmul.mubr.bf16.gmra.mrb[0].mxu0 %v354
        %v663 = vpop.f32.mrb[0].mxu0
        %v664 = vadd.f32 %v392, %v663
        %v665 = vpop.f32.mrb[0].mxu0
        %v666 = vadd.f32 %v396, %v665
        %v667 = vpop.f32.mrb[0].mxu0
        %v668 = vadd.f32 %v392, %v667
        %v669 = vpop.f32.mrb[0].mxu0
        %v670 = vadd.f32 %v396, %v669
        %671 = vmatprep.mubr.bf16.mxu0 0
        %672 = vmatmul.mubr.bf16.gmra.mrb[0].mxu0 %v355
        %v673 = vpop.f32.mrb[0].mxu0
        %v674 = vadd.f32 %v392, %v673
        %v675 = vpop.f32.mrb[0].mxu0
        %v676 = vadd.f32 %v396, %v675
        %v677 = vpop.f32.mrb[0].mxu0
        %v678 = vadd.f32 %v392, %v677
        %v679 = vpop.f32.mrb[0].mxu0
        %v680 = vadd.f32 %v396, %v679
        %681 = vmatprep.mubr.bf16.mxu0 0
        %682 = vmatmul.mubr.bf16.gmra.mrb[0].mxu0 %v356
        %v683 = vpop.f32.mrb[0].mxu0
        %v684 = vadd.f32 %v392, %v683
        %v685 = vpop.f32.mrb[0].mxu0
        %v686 = vadd.f32 %v396, %v685
        %v687 = vpop.f32.mrb[0].mxu0
        %v688 = vadd.f32 %v392, %v687
        %v689 = vpop.f32.mrb[0].mxu0
        %v690 = vadd.f32 %v396, %v689
        %691 = vmatprep.mubr.bf16.mxu0 0
        %692 = vmatmul.mubr.bf16.gmra.mrb[0].mxu0 %v357
        %v693 = vpop.f32.mrb[0].mxu0
        %v694 = vadd.f32 %v392, %v693
        %v695 = vpop.f32.mrb[0].mxu0
        %v696 = vadd.f32 %v396, %v695
        %v697 = vpop.f32.mrb[0].mxu0
        %v698 = vadd.f32 %v392, %v697
        %v699 = vpop.f32.mrb[0].mxu0
        %v700 = vadd.f32 %v396, %v699
        %701 = vmatprep.mubr.bf16.mxu0 0
        %702 = vmatmul.mubr.bf16.gmra.mrb[0].mxu0 %v358
        %v703 = vpop.f32.mrb[0].mxu0
        %v704 = vadd.f32 %v392, %v703
        %v705 = vpop.f32.mrb[0].mxu0
        %v706 = vadd.f32 %v396, %v705
        %v707 = vpop.f32.mrb[0].mxu0
        %v708 = vadd.f32 %v392, %v707
        %v709 = vpop.f32.mrb[0].mxu0
        %v710 = vadd.f32 %v396, %v709
        %711 = vmatprep.mubr.bf16.mxu0 0
        %712 = vmatmul.mubr.bf16.gmra.mrb[0].mxu0 %v359
        %v713 = vpop.f32.mrb[0].mxu0
        %v714 = vadd.f32 %v392, %v713
        %v715 = vpop.f32.mrb[0].mxu0
        %v716 = vadd.f32 %v396, %v715
        %v717 = vpop.f32.mrb[0].mxu0
        %v718 = vadd.f32 %v392, %v717
        %v719 = vpop.f32.mrb[0].mxu0
        %v720 = vadd.f32 %v396, %v719
        %721 = vmatprep.mubr.bf16.mxu0 0
        %722 = vmatmul.mubr.bf16.gmra.mrb[0].mxu0 %v360
        %v723 = vpop.f32.mrb[0].mxu0
        %v724 = vadd.f32 %v392, %v723
        %v725 = vpop.f32.mrb[0].mxu0
        %v726 = vadd.f32 %v396, %v725
        %v727 = vpop.f32.mrb[0].mxu0
        %v728 = vadd.f32 %v392, %v727
        %v729 = vpop.f32.mrb[0].mxu0
        %v730 = vadd.f32 %v396, %v729
        %731 = vmatprep.mubr.bf16.mxu0 0
        %732 = vmatmul.mubr.bf16.gmra.mrb[0].mxu0 %v361
        %v733 = vpop.f32.mrb[0].mxu0
        %v734 = vadd.f32 %v392, %v733
        %v735 = vpop.f32.mrb[0].mxu0
        %v736 = vadd.f32 %v396, %v735
        %v737 = vpop.f32.mrb[0].mxu0
        %v738 = vadd.f32 %v392, %v737
        %v739 = vpop.f32.mrb[0].mxu0
        %v740 = vadd.f32 %v396, %v739
        %741 = vmatprep.mubr.bf16.mxu0 0
        %742 = vmatmul.mubr.bf16.gmra.mrb[0].mxu0 %v362
        %v743 = vpop.f32.mrb[0].mxu0
        %v744 = vadd.f32 %v392, %v743
        %v745 = vpop.f32.mrb[0].mxu0
        %v746 = vadd.f32 %v396, %v745
        %v747 = vpop.f32.mrb[0].mxu0
        %v748 = vadd.f32 %v392, %v747
        %v749 = vpop.f32.mrb[0].mxu0
        %v750 = vadd.f32 %v396, %v749
        %751 = vmatprep.mubr.bf16.mxu0 0
        %752 = vmatmul.mubr.bf16.gmra.mrb[0].mxu0 %v363
        %v753 = vpop.f32.mrb[0].mxu0
        %v754 = vadd.f32 %v392, %v753
        %v755 = vpop.f32.mrb[0].mxu0
        %v756 = vadd.f32 %v396, %v755
        %v757 = vpop.f32.mrb[0].mxu0
        %v758 = vadd.f32 %v392, %v757
        %v759 = vpop.f32.mrb[0].mxu0
        %v760 = vadd.f32 %v396, %v759
        %761 = vmatprep.mubr.bf16.mxu0 0
        %762 = vmatmul.mubr.bf16.gmra.mrb[0].mxu0 %v364
        %v763 = vpop.f32.mrb[0].mxu0
        %v764 = vadd.f32 %v392, %v763
        %v765 = vpop.f32.mrb[0].mxu0
        %v766 = vadd.f32 %v396, %v765
        %v767 = vpop.f32.mrb[0].mxu0
        %v768 = vadd.f32 %v392, %v767
        %v769 = vpop.f32.mrb[0].mxu0
        %v770 = vadd.f32 %v396, %v769
        %771 = vmatprep.mubr.bf16.mxu0 0
        %772 = vmatmul.mubr.bf16.gmra.mrb[0].mxu0 %v365
        %v773 = vpop.f32.mrb[0].mxu0
        %v774 = vadd.f32 %v392, %v773
        %v775 = vpop.f32.mrb[0].mxu0
        %v776 = vadd.f32 %v396, %v775
        %v777 = vpop.f32.mrb[0].mxu0
        %v778 = vadd.f32 %v392, %v777
        %v779 = vpop.f32.mrb[0].mxu0
        %v780 = vadd.f32 %v396, %v779
        %781 = vmatprep.mubr.bf16.mxu0 0
        %782 = vmatmul.mubr.bf16.gmra.mrb[0].mxu0 %v366
        %v783 = vpop.f32.mrb[0].mxu0
        %v784 = vadd.f32 %v392, %v783
        %v785 = vpop.f32.mrb[0].mxu0
        %v786 = vadd.f32 %v396, %v785
        %v787 = vpop.f32.mrb[0].mxu0
        %v788 = vadd.f32 %v392, %v787
        %v789 = vpop.f32.mrb[0].mxu0
        %v790 = vadd.f32 %v396, %v789
        %791 = vmatprep.mubr.bf16.mxu0 0
        %792 = vmatmul.mubr.bf16.gmra.mrb[0].mxu0 %v367
        %v793 = vpop.f32.mrb[0].mxu0
        %v794 = vadd.f32 %v392, %v793
        %v795 = vpop.f32.mrb[0].mxu0
        %v796 = vadd.f32 %v396, %v795
        %v797 = vpop.f32.mrb[0].mxu0
        %v798 = vadd.f32 %v392, %v797
        %v799 = vpop.f32.mrb[0].mxu0
        %v800 = vadd.f32 %v396, %v799
        %801 = vmatprep.mubr.bf16.mxu0 0
        %802 = vmatmul.mubr.bf16.gmra.mrb[0].mxu0 %v368
        %v803 = vpop.f32.mrb[0].mxu0
        %v804 = vadd.f32 %v392, %v803
        %v805 = vpop.f32.mrb[0].mxu0
        %v806 = vadd.f32 %v396, %v805
        %v807 = vpop.f32.mrb[0].mxu0
        %v808 = vadd.f32 %v392, %v807
        %v809 = vpop.f32.mrb[0].mxu0
        %v810 = vadd.f32 %v396, %v809
        %811 = vmatprep.mubr.bf16.mxu0 0
        %812 = vmatmul.mubr.bf16.gmra.mrb[0].mxu0 %v369
        %v813 = vpop.f32.mrb[0].mxu0
        %v814 = vadd.f32 %v392, %v813
        %v815 = vpop.f32.mrb[0].mxu0
        %v816 = vadd.f32 %v396, %v815
        %v817 = vpop.f32.mrb[0].mxu0
        %v818 = vadd.f32 %v392, %v817
        %v819 = vpop.f32.mrb[0].mxu0
        %v820 = vadd.f32 %v396, %v819
        %821 = vmatprep.mubr.bf16.mxu0 0
        %822 = vmatmul.mubr.bf16.gmra.mrb[0].mxu0 %v370
        %v823 = vpop.f32.mrb[0].mxu0
        %v824 = vadd.f32 %v392, %v823
        %v825 = vpop.f32.mrb[0].mxu0
        %v826 = vadd.f32 %v396, %v825
        %v827 = vpop.f32.mrb[0].mxu0
        %v828 = vadd.f32 %v392, %v827
        %v829 = vpop.f32.mrb[0].mxu0
        %v830 = vadd.f32 %v396, %v829
        %831 = vdwg.mxu0
        %v832 = vmul.f32 %v514, 0.5
        %v833 = vmul.f32 %v516, 0.5
        %v834 = vmul.f32 %v518, 0.5
        %v835 = vmul.f32 %v520, 0.5
        %v836 = vmul.f32 %v524, 0.5
        %v837 = vmul.f32 %v526, 0.5
        %v838 = vmul.f32 %v528, 0.5
        %v839 = vmul.f32 %v530, 0.5
        %v840 = vmul.f32 %v534, 0.5
        %v841 = vmul.f32 %v536, 0.5
        %v842 = vmul.f32 %v538, 0.5
        %v843 = vmul.f32 %v540, 0.5
        %v844 = vmul.f32 %v544, 0.5
        %v845 = vmul.f32 %v546, 0.5
        %v846 = vmul.f32 %v548, 0.5
        %v847 = vmul.f32 %v550, 0.5
        %v848 = vmul.f32 %v554, 0.5
        %v849 = vmul.f32 %v556, 0.5
        %v850 = vmul.f32 %v558, 0.5
        %v851 = vmul.f32 %v560, 0.5
        %v852 = vmul.f32 %v564, 0.5
        %v853 = vmul.f32 %v566, 0.5
        %v854 = vmul.f32 %v568, 0.5
        %v855 = vmul.f32 %v570, 0.5
        %v856 = vmul.f32 %v574, 0.5
        %v857 = vmul.f32 %v576, 0.5
        %v858 = vmul.f32 %v578, 0.5
        %v859 = vmul.f32 %v580, 0.5
        %v860 = vmul.f32 %v584, 0.5
        %v861 = vmul.f32 %v586, 0.5
        %v862 = vmul.f32 %v588, 0.5
        %v863 = vmul.f32 %v590, 0.5
        %v864 = vmul.f32 %v594, 0.5
        %v865 = vmul.f32 %v596, 0.5
        %v866 = vmul.f32 %v598, 0.5
        %v867 = vmul.f32 %v600, 0.5
        %v868 = vmul.f32 %v604, 0.5
        %v869 = vmul.f32 %v606, 0.5
        %v870 = vmul.f32 %v608, 0.5
        %v871 = vmul.f32 %v610, 0.5
        %v872 = vmul.f32 %v614, 0.5
        %v873 = vmul.f32 %v616, 0.5
        %v874 = vmul.f32 %v618, 0.5
        %v875 = vmul.f32 %v620, 0.5
        %v876 = vmul.f32 %v624, 0.5
        %v877 = vmul.f32 %v626, 0.5
        %v878 = vmul.f32 %v628, 0.5
        %v879 = vmul.f32 %v630, 0.5
        %v880 = vmul.f32 %v634, 0.5
        %v881 = vmul.f32 %v636, 0.5
        %v882 = vmul.f32 %v638, 0.5
        %v883 = vmul.f32 %v640, 0.5
        %v884 = vmul.f32 %v644, 0.5
        %v885 = vmul.f32 %v646, 0.5
        %v886 = vmul.f32 %v648, 0.5
        %v887 = vmul.f32 %v650, 0.5
        %v888 = vmul.f32 %v654, 0.5
        %v889 = vmul.f32 %v656, 0.5
        %v890 = vmul.f32 %v658, 0.5
        %v891 = vmul.f32 %v660, 0.5
        %v892 = vmul.f32 %v664, 0.5
        %v893 = vmul.f32 %v666, 0.5
        %v894 = vmul.f32 %v668, 0.5
        %v895 = vmul.f32 %v670, 0.5
        %v896 = vmul.f32 %v674, 0.5
        %v897 = vmul.f32 %v676, 0.5
        %v898 = vmul.f32 %v678, 0.5
        %v899 = vmul.f32 %v680, 0.5
        %v900 = vmul.f32 %v684, 0.5
        %v901 = vmul.f32 %v686, 0.5
        %v902 = vmul.f32 %v688, 0.5
        %v903 = vmul.f32 %v690, 0.5
        %v904 = vmul.f32 %v694, 0.5
        %v905 = vmul.f32 %v696, 0.5
        %v906 = vmul.f32 %v698, 0.5
        %v907 = vmul.f32 %v700, 0.5
        %v908 = vmul.f32 %v704, 0.5
        %v909 = vmul.f32 %v706, 0.5
        %v910 = vmul.f32 %v708, 0.5
        %v911 = vmul.f32 %v710, 0.5
        %v912 = vmul.f32 %v714, 0.5
        %v913 = vmul.f32 %v716, 0.5
        %v914 = vmul.f32 %v718, 0.5
        %v915 = vmul.f32 %v720, 0.5
        %v916 = vmul.f32 %v724, 0.5
        %v917 = vmul.f32 %v726, 0.5
        %v918 = vmul.f32 %v728, 0.5
        %v919 = vmul.f32 %v730, 0.5
        %v920 = vmul.f32 %v734, 0.5
        %v921 = vmul.f32 %v736, 0.5
        %v922 = vmul.f32 %v738, 0.5
        %v923 = vmul.f32 %v740, 0.5
        %v924 = vmul.f32 %v744, 0.5
        %v925 = vmul.f32 %v746, 0.5
        %v926 = vmul.f32 %v748, 0.5
        %v927 = vmul.f32 %v750, 0.5
        %v928 = vmul.f32 %v754, 0.5
        %v929 = vmul.f32 %v756, 0.5
        %v930 = vmul.f32 %v758, 0.5
        %v931 = vmul.f32 %v760, 0.5
        %v932 = vmul.f32 %v764, 0.5
        %v933 = vmul.f32 %v766, 0.5
        %v934 = vmul.f32 %v768, 0.5
        %v935 = vmul.f32 %v770, 0.5
        %v936 = vmul.f32 %v774, 0.5
        %v937 = vmul.f32 %v776, 0.5
        %v938 = vmul.f32 %v778, 0.5
        %v939 = vmul.f32 %v780, 0.5
        %v940 = vmul.f32 %v784, 0.5
        %v941 = vmul.f32 %v786, 0.5
        %v942 = vmul.f32 %v788, 0.5
        %v943 = vmul.f32 %v790, 0.5
        %v944 = vmul.f32 %v794, 0.5
        %v945 = vmul.f32 %v796, 0.5
        %v946 = vmul.f32 %v798, 0.5
        %v947 = vmul.f32 %v800, 0.5
        %v948 = vmul.f32 %v804, 0.5
        %v949 = vmul.f32 %v806, 0.5
        %v950 = vmul.f32 %v808, 0.5
        %v951 = vmul.f32 %v810, 0.5
        %v952 = vmul.f32 %v814, 0.5
        %v953 = vmul.f32 %v816, 0.5
        %v954 = vmul.f32 %v818, 0.5
        %v955 = vmul.f32 %v820, 0.5
        %v956 = vmul.f32 %v824, 0.5
        %v957 = vmul.f32 %v826, 0.5
        %v958 = vmul.f32 %v828, 0.5
        %v959 = vmul.f32 %v830, 0.5
        %v960 = vmul.f32 %v514, 0.7978846
        %v961 = vmul.f32 %v516, 0.7978846
        %v962 = vmul.f32 %v518, 0.7978846
        %v963 = vmul.f32 %v520, 0.7978846
        %v964 = vmul.f32 %v524, 0.7978846
        %v965 = vmul.f32 %v526, 0.7978846
        %v966 = vmul.f32 %v528, 0.7978846
        %v967 = vmul.f32 %v530, 0.7978846
        %v968 = vmul.f32 %v534, 0.7978846
        %v969 = vmul.f32 %v536, 0.7978846
        %v970 = vmul.f32 %v538, 0.7978846
        %v971 = vmul.f32 %v540, 0.7978846
        %v972 = vmul.f32 %v544, 0.7978846
        %v973 = vmul.f32 %v546, 0.7978846
        %v974 = vmul.f32 %v548, 0.7978846
        %v975 = vmul.f32 %v550, 0.7978846
        %v976 = vmul.f32 %v554, 0.7978846
        %v977 = vmul.f32 %v556, 0.7978846
        %v978 = vmul.f32 %v558, 0.7978846
        %v979 = vmul.f32 %v560, 0.7978846
        %v980 = vmul.f32 %v564, 0.7978846
        %v981 = vmul.f32 %v566, 0.7978846
        %v982 = vmul.f32 %v568, 0.7978846
        %v983 = vmul.f32 %v570, 0.7978846
        %v984 = vmul.f32 %v574, 0.7978846
        %v985 = vmul.f32 %v576, 0.7978846
        %v986 = vmul.f32 %v578, 0.7978846
        %v987 = vmul.f32 %v580, 0.7978846
        %v988 = vmul.f32 %v584, 0.7978846
        %v989 = vmul.f32 %v586, 0.7978846
        %v990 = vmul.f32 %v588, 0.7978846
        %v991 = vmul.f32 %v590, 0.7978846
        %v992 = vmul.f32 %v594, 0.7978846
        %v993 = vmul.f32 %v596, 0.7978846
        %v994 = vmul.f32 %v598, 0.7978846
        %v995 = vmul.f32 %v600, 0.7978846
        %v996 = vmul.f32 %v604, 0.7978846
        %v997 = vmul.f32 %v606, 0.7978846
        %v998 = vmul.f32 %v608, 0.7978846
        %v999 = vmul.f32 %v610, 0.7978846
        %v1000 = vmul.f32 %v614, 0.7978846
        %v1001 = vmul.f32 %v616, 0.7978846
        %v1002 = vmul.f32 %v618, 0.7978846
        %v1003 = vmul.f32 %v620, 0.7978846
        %v1004 = vmul.f32 %v624, 0.7978846
        %v1005 = vmul.f32 %v626, 0.7978846
        %v1006 = vmul.f32 %v628, 0.7978846
        %v1007 = vmul.f32 %v630, 0.7978846
        %v1008 = vmul.f32 %v634, 0.7978846
        %v1009 = vmul.f32 %v636, 0.7978846
        %v1010 = vmul.f32 %v638, 0.7978846
        %v1011 = vmul.f32 %v640, 0.7978846
        %v1012 = vmul.f32 %v644, 0.7978846
        %v1013 = vmul.f32 %v646, 0.7978846
        %v1014 = vmul.f32 %v648, 0.7978846
        %v1015 = vmul.f32 %v650, 0.7978846
        %v1016 = vmul.f32 %v654, 0.7978846
        %v1017 = vmul.f32 %v656, 0.7978846
        %v1018 = vmul.f32 %v658, 0.7978846
        %v1019 = vmul.f32 %v660, 0.7978846
        %v1020 = vmul.f32 %v664, 0.7978846
        %v1021 = vmul.f32 %v666, 0.7978846
        %v1022 = vmul.f32 %v668, 0.7978846
        %v1023 = vmul.f32 %v670, 0.7978846
        %v1024 = vmul.f32 %v674, 0.7978846
        %v1025 = vmul.f32 %v676, 0.7978846
        %v1026 = vmul.f32 %v678, 0.7978846
        %v1027 = vmul.f32 %v680, 0.7978846
        %v1028 = vmul.f32 %v684, 0.7978846
        %v1029 = vmul.f32 %v686, 0.7978846
        %v1030 = vmul.f32 %v688, 0.7978846
        %v1031 = vmul.f32 %v690, 0.7978846
        %v1032 = vmul.f32 %v694, 0.7978846
        %v1033 = vmul.f32 %v696, 0.7978846
        %v1034 = vmul.f32 %v698, 0.7978846
        %v1035 = vmul.f32 %v700, 0.7978846
        %v1036 = vmul.f32 %v704, 0.7978846
        %v1037 = vmul.f32 %v706, 0.7978846
        %v1038 = vmul.f32 %v708, 0.7978846
        %v1039 = vmul.f32 %v710, 0.7978846
        %v1040 = vmul.f32 %v714, 0.7978846
        %v1041 = vmul.f32 %v716, 0.7978846
        %v1042 = vmul.f32 %v718, 0.7978846
        %v1043 = vmul.f32 %v720, 0.7978846
        %v1044 = vmul.f32 %v724, 0.7978846
        %v1045 = vmul.f32 %v726, 0.7978846
        %v1046 = vmul.f32 %v728, 0.7978846
        %v1047 = vmul.f32 %v730, 0.7978846
        %v1048 = vmul.f32 %v734, 0.7978846
        %v1049 = vmul.f32 %v736, 0.7978846
        %v1050 = vmul.f32 %v738, 0.7978846
        %v1051 = vmul.f32 %v740, 0.7978846
        %v1052 = vmul.f32 %v744, 0.7978846
        %v1053 = vmul.f32 %v746, 0.7978846
        %v1054 = vmul.f32 %v748, 0.7978846
        %v1055 = vmul.f32 %v750, 0.7978846
        %v1056 = vmul.f32 %v754, 0.7978846
        %v1057 = vmul.f32 %v756, 0.7978846
        %v1058 = vmul.f32 %v758, 0.7978846
        %v1059 = vmul.f32 %v760, 0.7978846
        %v1060 = vmul.f32 %v764, 0.7978846
        %v1061 = vmul.f32 %v766, 0.7978846
        %v1062 = vmul.f32 %v768, 0.7978846
        %v1063 = vmul.f32 %v770, 0.7978846
        %v1064 = vmul.f32 %v774, 0.7978846
        %v1065 = vmul.f32 %v776, 0.7978846
        %v1066 = vmul.f32 %v778, 0.7978846
        %v1067 = vmul.f32 %v780, 0.7978846
        %v1068 = vmul.f32 %v784, 0.7978846
        %v1069 = vmul.f32 %v786, 0.7978846
        %v1070 = vmul.f32 %v788, 0.7978846
        %v1071 = vmul.f32 %v790, 0.7978846
        %v1072 = vmul.f32 %v794, 0.7978846
        %v1073 = vmul.f32 %v796, 0.7978846
        %v1074 = vmul.f32 %v798, 0.7978846
        %v1075 = vmul.f32 %v800, 0.7978846
        %v1076 = vmul.f32 %v804, 0.7978846
        %v1077 = vmul.f32 %v806, 0.7978846
        %v1078 = vmul.f32 %v808, 0.7978846
        %v1079 = vmul.f32 %v810, 0.7978846
        %v1080 = vmul.f32 %v814, 0.7978846
        %v1081 = vmul.f32 %v816, 0.7978846
        %v1082 = vmul.f32 %v818, 0.7978846
        %v1083 = vmul.f32 %v820, 0.7978846
        %v1084 = vmul.f32 %v824, 0.7978846
        %v1085 = vmul.f32 %v826, 0.7978846
        %v1086 = vmul.f32 %v828, 0.7978846
        %v1087 = vmul.f32 %v830, 0.7978846
        %v1088 = vmul.f32 %v514, 0.044715
        %v1089 = vmul.f32 %v516, 0.044715
        %v1090 = vmul.f32 %v518, 0.044715
        %v1091 = vmul.f32 %v520, 0.044715
        %v1092 = vmul.f32 %v524, 0.044715
        %v1093 = vmul.f32 %v526, 0.044715
        %v1094 = vmul.f32 %v528, 0.044715
        %v1095 = vmul.f32 %v530, 0.044715
        %v1096 = vmul.f32 %v534, 0.044715
        %v1097 = vmul.f32 %v536, 0.044715
        %v1098 = vmul.f32 %v538, 0.044715
        %v1099 = vmul.f32 %v540, 0.044715
        %v1100 = vmul.f32 %v544, 0.044715
        %v1101 = vmul.f32 %v546, 0.044715
        %v1102 = vmul.f32 %v548, 0.044715
        %v1103 = vmul.f32 %v550, 0.044715
        %v1104 = vmul.f32 %v554, 0.044715
        %v1105 = vmul.f32 %v556, 0.044715
        %v1106 = vmul.f32 %v558, 0.044715
        %v1107 = vmul.f32 %v560, 0.044715
        %v1108 = vmul.f32 %v564, 0.044715
        %v1109 = vmul.f32 %v566, 0.044715
        %v1110 = vmul.f32 %v568, 0.044715
        %v1111 = vmul.f32 %v570, 0.044715
        %v1112 = vmul.f32 %v574, 0.044715
        %v1113 = vmul.f32 %v576, 0.044715
        %v1114 = vmul.f32 %v578, 0.044715
        %v1115 = vmul.f32 %v580, 0.044715
        %v1116 = vmul.f32 %v584, 0.044715
        %v1117 = vmul.f32 %v586, 0.044715
        %v1118 = vmul.f32 %v588, 0.044715
        %v1119 = vmul.f32 %v590, 0.044715
        %v1120 = vmul.f32 %v594, 0.044715
        %v1121 = vmul.f32 %v596, 0.044715
        %v1122 = vmul.f32 %v598, 0.044715
        %v1123 = vmul.f32 %v600, 0.044715
        %v1124 = vmul.f32 %v604, 0.044715
        %v1125 = vmul.f32 %v606, 0.044715
        %v1126 = vmul.f32 %v608, 0.044715
        %v1127 = vmul.f32 %v610, 0.044715
        %v1128 = vmul.f32 %v614, 0.044715
        %v1129 = vmul.f32 %v616, 0.044715
        %v1130 = vmul.f32 %v618, 0.044715
        %v1131 = vmul.f32 %v620, 0.044715
        %v1132 = vmul.f32 %v624, 0.044715
        %v1133 = vmul.f32 %v626, 0.044715
        %v1134 = vmul.f32 %v628, 0.044715
        %v1135 = vmul.f32 %v630, 0.044715
        %v1136 = vmul.f32 %v634, 0.044715
        %v1137 = vmul.f32 %v636, 0.044715
        %v1138 = vmul.f32 %v638, 0.044715
        %v1139 = vmul.f32 %v640, 0.044715
        %v1140 = vmul.f32 %v644, 0.044715
        %v1141 = vmul.f32 %v646, 0.044715
        %v1142 = vmul.f32 %v648, 0.044715
        %v1143 = vmul.f32 %v650, 0.044715
        %v1144 = vmul.f32 %v654, 0.044715
        %v1145 = vmul.f32 %v656, 0.044715
        %v1146 = vmul.f32 %v658, 0.044715
        %v1147 = vmul.f32 %v660, 0.044715
        %v1148 = vmul.f32 %v664, 0.044715
        %v1149 = vmul.f32 %v666, 0.044715
        %v1150 = vmul.f32 %v668, 0.044715
        %v1151 = vmul.f32 %v670, 0.044715
        %v1152 = vmul.f32 %v674, 0.044715
        %v1153 = vmul.f32 %v676, 0.044715
        %v1154 = vmul.f32 %v678, 0.044715
        %v1155 = vmul.f32 %v680, 0.044715
        %v1156 = vmul.f32 %v684, 0.044715
        %v1157 = vmul.f32 %v686, 0.044715
        %v1158 = vmul.f32 %v688, 0.044715
        %v1159 = vmul.f32 %v690, 0.044715
        %v1160 = vmul.f32 %v694, 0.044715
        %v1161 = vmul.f32 %v696, 0.044715
        %v1162 = vmul.f32 %v698, 0.044715
        %v1163 = vmul.f32 %v700, 0.044715
        %v1164 = vmul.f32 %v704, 0.044715
        %v1165 = vmul.f32 %v706, 0.044715
        %v1166 = vmul.f32 %v708, 0.044715
        %v1167 = vmul.f32 %v710, 0.044715
        %v1168 = vmul.f32 %v714, 0.044715
        %v1169 = vmul.f32 %v716, 0.044715
        %v1170 = vmul.f32 %v718, 0.044715
        %v1171 = vmul.f32 %v720, 0.044715
        %v1172 = vmul.f32 %v724, 0.044715
        %v1173 = vmul.f32 %v726, 0.044715
        %v1174 = vmul.f32 %v728, 0.044715
        %v1175 = vmul.f32 %v730, 0.044715
        %v1176 = vmul.f32 %v734, 0.044715
        %v1177 = vmul.f32 %v736, 0.044715
        %v1178 = vmul.f32 %v738, 0.044715
        %v1179 = vmul.f32 %v740, 0.044715
        %v1180 = vmul.f32 %v744, 0.044715
        %v1181 = vmul.f32 %v746, 0.044715
        %v1182 = vmul.f32 %v748, 0.044715
        %v1183 = vmul.f32 %v750, 0.044715
        %v1184 = vmul.f32 %v754, 0.044715
        %v1185 = vmul.f32 %v756, 0.044715
        %v1186 = vmul.f32 %v758, 0.044715
        %v1187 = vmul.f32 %v760, 0.044715
        %v1188 = vmul.f32 %v764, 0.044715
        %v1189 = vmul.f32 %v766, 0.044715
        %v1190 = vmul.f32 %v768, 0.044715
        %v1191 = vmul.f32 %v770, 0.044715
        %v1192 = vmul.f32 %v774, 0.044715
        %v1193 = vmul.f32 %v776, 0.044715
        %v1194 = vmul.f32 %v778, 0.044715
        %v1195 = vmul.f32 %v780, 0.044715
        %v1196 = vmul.f32 %v784, 0.044715
        %v1197 = vmul.f32 %v786, 0.044715
        %v1198 = vmul.f32 %v788, 0.044715
        %v1199 = vmul.f32 %v790, 0.044715
        %v1200 = vmul.f32 %v794, 0.044715
        %v1201 = vmul.f32 %v796, 0.044715
        %v1202 = vmul.f32 %v798, 0.044715
        %v1203 = vmul.f32 %v800, 0.044715
        %v1204 = vmul.f32 %v804, 0.044715
        %v1205 = vmul.f32 %v806, 0.044715
        %v1206 = vmul.f32 %v808, 0.044715
        %v1207 = vmul.f32 %v810, 0.044715
        %v1208 = vmul.f32 %v814, 0.044715
        %v1209 = vmul.f32 %v816, 0.044715
        %v1210 = vmul.f32 %v818, 0.044715
        %v1211 = vmul.f32 %v820, 0.044715
        %v1212 = vmul.f32 %v824, 0.044715
        %v1213 = vmul.f32 %v826, 0.044715
        %v1214 = vmul.f32 %v828, 0.044715
        %v1215 = vmul.f32 %v830, 0.044715
        %v1216 = vmul.f32 %v1088, %v514
        %v1217 = vmul.f32 %v1089, %v516
        %v1218 = vmul.f32 %v1090, %v518
        %v1219 = vmul.f32 %v1091, %v520
        %v1220 = vmul.f32 %v1092, %v524
        %v1221 = vmul.f32 %v1093, %v526
        %v1222 = vmul.f32 %v1094, %v528
        %v1223 = vmul.f32 %v1095, %v530
        %v1224 = vmul.f32 %v1096, %v534
        %v1225 = vmul.f32 %v1097, %v536
        %v1226 = vmul.f32 %v1098, %v538
        %v1227 = vmul.f32 %v1099, %v540
        %v1228 = vmul.f32 %v1100, %v544
        %v1229 = vmul.f32 %v1101, %v546
        %v1230 = vmul.f32 %v1102, %v548
        %v1231 = vmul.f32 %v1103, %v550
        %v1232 = vmul.f32 %v1104, %v554
        %v1233 = vmul.f32 %v1105, %v556
        %v1234 = vmul.f32 %v1106, %v558
        %v1235 = vmul.f32 %v1107, %v560
        %v1236 = vmul.f32 %v1108, %v564
        %v1237 = vmul.f32 %v1109, %v566
        %v1238 = vmul.f32 %v1110, %v568
        %v1239 = vmul.f32 %v1111, %v570
        %v1240 = vmul.f32 %v1112, %v574
        %v1241 = vmul.f32 %v1113, %v576
        %v1242 = vmul.f32 %v1114, %v578
        %v1243 = vmul.f32 %v1115, %v580
        %v1244 = vmul.f32 %v1116, %v584
        %v1245 = vmul.f32 %v1117, %v586
        %v1246 = vmul.f32 %v1118, %v588
        %v1247 = vmul.f32 %v1119, %v590
        %v1248 = vmul.f32 %v1120, %v594
        %v1249 = vmul.f32 %v1121, %v596
        %v1250 = vmul.f32 %v1122, %v598
        %v1251 = vmul.f32 %v1123, %v600
        %v1252 = vmul.f32 %v1124, %v604
        %v1253 = vmul.f32 %v1125, %v606
        %v1254 = vmul.f32 %v1126, %v608
        %v1255 = vmul.f32 %v1127, %v610
        %v1256 = vmul.f32 %v1128, %v614
        %v1257 = vmul.f32 %v1129, %v616
        %v1258 = vmul.f32 %v1130, %v618
        %v1259 = vmul.f32 %v1131, %v620
        %v1260 = vmul.f32 %v1132, %v624
        %v1261 = vmul.f32 %v1133, %v626
        %v1262 = vmul.f32 %v1134, %v628
        %v1263 = vmul.f32 %v1135, %v630
        %v1264 = vmul.f32 %v1136, %v634
        %v1265 = vmul.f32 %v1137, %v636
        %v1266 = vmul.f32 %v1138, %v638
        %v1267 = vmul.f32 %v1139, %v640
        %v1268 = vmul.f32 %v1140, %v644
        %v1269 = vmul.f32 %v1141, %v646
        %v1270 = vmul.f32 %v1142, %v648
        %v1271 = vmul.f32 %v1143, %v650
        %v1272 = vmul.f32 %v1144, %v654
        %v1273 = vmul.f32 %v1145, %v656
        %v1274 = vmul.f32 %v1146, %v658
        %v1275 = vmul.f32 %v1147, %v660
        %v1276 = vmul.f32 %v1148, %v664
        %v1277 = vmul.f32 %v1149, %v666
        %v1278 = vmul.f32 %v1150, %v668
        %v1279 = vmul.f32 %v1151, %v670
        %v1280 = vmul.f32 %v1152, %v674
        %v1281 = vmul.f32 %v1153, %v676
        %v1282 = vmul.f32 %v1154, %v678
        %v1283 = vmul.f32 %v1155, %v680
        %v1284 = vmul.f32 %v1156, %v684
        %v1285 = vmul.f32 %v1157, %v686
        %v1286 = vmul.f32 %v1158, %v688
        %v1287 = vmul.f32 %v1159, %v690
        %v1288 = vmul.f32 %v1160, %v694
        %v1289 = vmul.f32 %v1161, %v696
        %v1290 = vmul.f32 %v1162, %v698
        %v1291 = vmul.f32 %v1163, %v700
        %v1292 = vmul.f32 %v1164, %v704
        %v1293 = vmul.f32 %v1165, %v706
        %v1294 = vmul.f32 %v1166, %v708
        %v1295 = vmul.f32 %v1167, %v710
        %v1296 = vmul.f32 %v1168, %v714
        %v1297 = vmul.f32 %v1169, %v716
        %v1298 = vmul.f32 %v1170, %v718
        %v1299 = vmul.f32 %v1171, %v720
        %v1300 = vmul.f32 %v1172, %v724
        %v1301 = vmul.f32 %v1173, %v726
        %v1302 = vmul.f32 %v1174, %v728
        %v1303 = vmul.f32 %v1175, %v730
        %v1304 = vmul.f32 %v1176, %v734
        %v1305 = vmul.f32 %v1177, %v736
        %v1306 = vmul.f32 %v1178, %v738
        %v1307 = vmul.f32 %v1179, %v740
        %v1308 = vmul.f32 %v1180, %v744
        %v1309 = vmul.f32 %v1181, %v746
        %v1310 = vmul.f32 %v1182, %v748
        %v1311 = vmul.f32 %v1183, %v750
        %v1312 = vmul.f32 %v1184, %v754
        %v1313 = vmul.f32 %v1185, %v756
        %v1314 = vmul.f32 %v1186, %v758
        %v1315 = vmul.f32 %v1187, %v760
        %v1316 = vmul.f32 %v1188, %v764
        %v1317 = vmul.f32 %v1189, %v766
        %v1318 = vmul.f32 %v1190, %v768
        %v1319 = vmul.f32 %v1191, %v770
        %v1320 = vmul.f32 %v1192, %v774
        %v1321 = vmul.f32 %v1193, %v776
        %v1322 = vmul.f32 %v1194, %v778
        %v1323 = vmul.f32 %v1195, %v780
        %v1324 = vmul.f32 %v1196, %v784
        %v1325 = vmul.f32 %v1197, %v786
        %v1326 = vmul.f32 %v1198, %v788
        %v1327 = vmul.f32 %v1199, %v790
        %v1328 = vmul.f32 %v1200, %v794
        %v1329 = vmul.f32 %v1201, %v796
        %v1330 = vmul.f32 %v1202, %v798
        %v1331 = vmul.f32 %v1203, %v800
        %v1332 = vmul.f32 %v1204, %v804
        %v1333 = vmul.f32 %v1205, %v806
        %v1334 = vmul.f32 %v1206, %v808
        %v1335 = vmul.f32 %v1207, %v810
        %v1336 = vmul.f32 %v1208, %v814
        %v1337 = vmul.f32 %v1209, %v816
        %v1338 = vmul.f32 %v1210, %v818
        %v1339 = vmul.f32 %v1211, %v820
        %v1340 = vmul.f32 %v1212, %v824
        %v1341 = vmul.f32 %v1213, %v826
        %v1342 = vmul.f32 %v1214, %v828
        %v1343 = vmul.f32 %v1215, %v830
        %v1344 = vadd.f32 %v1216, 1.0
        %v1345 = vadd.f32 %v1217, 1.0
        %v1346 = vadd.f32 %v1218, 1.0
        %v1347 = vadd.f32 %v1219, 1.0
        %v1348 = vadd.f32 %v1220, 1.0
        %v1349 = vadd.f32 %v1221, 1.0
        %v1350 = vadd.f32 %v1222, 1.0
        %v1351 = vadd.f32 %v1223, 1.0
        %v1352 = vadd.f32 %v1224, 1.0
        %v1353 = vadd.f32 %v1225, 1.0
        %v1354 = vadd.f32 %v1226, 1.0
        %v1355 = vadd.f32 %v1227, 1.0
        %v1356 = vadd.f32 %v1228, 1.0
        %v1357 = vadd.f32 %v1229, 1.0
        %v1358 = vadd.f32 %v1230, 1.0
        %v1359 = vadd.f32 %v1231, 1.0
        %v1360 = vadd.f32 %v1232, 1.0
        %v1361 = vadd.f32 %v1233, 1.0
        %v1362 = vadd.f32 %v1234, 1.0
        %v1363 = vadd.f32 %v1235, 1.0
        %v1364 = vadd.f32 %v1236, 1.0
        %v1365 = vadd.f32 %v1237, 1.0
        %v1366 = vadd.f32 %v1238, 1.0
        %v1367 = vadd.f32 %v1239, 1.0
        %v1368 = vadd.f32 %v1240, 1.0
        %v1369 = vadd.f32 %v1241, 1.0
        %v1370 = vadd.f32 %v1242, 1.0
        %v1371 = vadd.f32 %v1243, 1.0
        %v1372 = vadd.f32 %v1244, 1.0
        %v1373 = vadd.f32 %v1245, 1.0
        %v1374 = vadd.f32 %v1246, 1.0
        %v1375 = vadd.f32 %v1247, 1.0
        %v1376 = vadd.f32 %v1248, 1.0
        %v1377 = vadd.f32 %v1249, 1.0
        %v1378 = vadd.f32 %v1250, 1.0
        %v1379 = vadd.f32 %v1251, 1.0
        %v1380 = vadd.f32 %v1252, 1.0
        %v1381 = vadd.f32 %v1253, 1.0
        %v1382 = vadd.f32 %v1254, 1.0
        %v1383 = vadd.f32 %v1255, 1.0
        %v1384 = vadd.f32 %v1256, 1.0
        %v1385 = vadd.f32 %v1257, 1.0
        %v1386 = vadd.f32 %v1258, 1.0
        %v1387 = vadd.f32 %v1259, 1.0
        %v1388 = vadd.f32 %v1260, 1.0
        %v1389 = vadd.f32 %v1261, 1.0
        %v1390 = vadd.f32 %v1262, 1.0
        %v1391 = vadd.f32 %v1263, 1.0
        %v1392 = vadd.f32 %v1264, 1.0
        %v1393 = vadd.f32 %v1265, 1.0
        %v1394 = vadd.f32 %v1266, 1.0
        %v1395 = vadd.f32 %v1267, 1.0
        %v1396 = vadd.f32 %v1268, 1.0
        %v1397 = vadd.f32 %v1269, 1.0
        %v1398 = vadd.f32 %v1270, 1.0
        %v1399 = vadd.f32 %v1271, 1.0
        %v1400 = vadd.f32 %v1272, 1.0
        %v1401 = vadd.f32 %v1273, 1.0
        %v1402 = vadd.f32 %v1274, 1.0
        %v1403 = vadd.f32 %v1275, 1.0
        %v1404 = vadd.f32 %v1276, 1.0
        %v1405 = vadd.f32 %v1277, 1.0
        %v1406 = vadd.f32 %v1278, 1.0
        %v1407 = vadd.f32 %v1279, 1.0
        %v1408 = vadd.f32 %v1280, 1.0
        %v1409 = vadd.f32 %v1281, 1.0
        %v1410 = vadd.f32 %v1282, 1.0
        %v1411 = vadd.f32 %v1283, 1.0
        %v1412 = vadd.f32 %v1284, 1.0
        %v1413 = vadd.f32 %v1285, 1.0
        %v1414 = vadd.f32 %v1286, 1.0
        %v1415 = vadd.f32 %v1287, 1.0
        %v1416 = vadd.f32 %v1288, 1.0
        %v1417 = vadd.f32 %v1289, 1.0
        %v1418 = vadd.f32 %v1290, 1.0
        %v1419 = vadd.f32 %v1291, 1.0
        %v1420 = vadd.f32 %v1292, 1.0
        %v1421 = vadd.f32 %v1293, 1.0
        %v1422 = vadd.f32 %v1294, 1.0
        %v1423 = vadd.f32 %v1295, 1.0
        %v1424 = vadd.f32 %v1296, 1.0
        %v1425 = vadd.f32 %v1297, 1.0
        %v1426 = vadd.f32 %v1298, 1.0
        %v1427 = vadd.f32 %v1299, 1.0
        %v1428 = vadd.f32 %v1300, 1.0
        %v1429 = vadd.f32 %v1301, 1.0
        %v1430 = vadd.f32 %v1302, 1.0
        %v1431 = vadd.f32 %v1303, 1.0
        %v1432 = vadd.f32 %v1304, 1.0
        %v1433 = vadd.f32 %v1305, 1.0
        %v1434 = vadd.f32 %v1306, 1.0
        %v1435 = vadd.f32 %v1307, 1.0
        %v1436 = vadd.f32 %v1308, 1.0
        %v1437 = vadd.f32 %v1309, 1.0
        %v1438 = vadd.f32 %v1310, 1.0
        %v1439 = vadd.f32 %v1311, 1.0
        %v1440 = vadd.f32 %v1312, 1.0
        %v1441 = vadd.f32 %v1313, 1.0
        %v1442 = vadd.f32 %v1314, 1.0
        %v1443 = vadd.f32 %v1315, 1.0
        %v1444 = vadd.f32 %v1316, 1.0
        %v1445 = vadd.f32 %v1317, 1.0
        %v1446 = vadd.f32 %v1318, 1.0
        %v1447 = vadd.f32 %v1319, 1.0
        %v1448 = vadd.f32 %v1320, 1.0
        %v1449 = vadd.f32 %v1321, 1.0
        %v1450 = vadd.f32 %v1322, 1.0
        %v1451 = vadd.f32 %v1323, 1.0
        %v1452 = vadd.f32 %v1324, 1.0
        %v1453 = vadd.f32 %v1325, 1.0
        %v1454 = vadd.f32 %v1326, 1.0
        %v1455 = vadd.f32 %v1327, 1.0
        %v1456 = vadd.f32 %v1328, 1.0
        %v1457 = vadd.f32 %v1329, 1.0
        %v1458 = vadd.f32 %v1330, 1.0
        %v1459 = vadd.f32 %v1331, 1.0
        %v1460 = vadd.f32 %v1332, 1.0
        %v1461 = vadd.f32 %v1333, 1.0
        %v1462 = vadd.f32 %v1334, 1.0
        %v1463 = vadd.f32 %v1335, 1.0
        %v1464 = vadd.f32 %v1336, 1.0
        %v1465 = vadd.f32 %v1337, 1.0
        %v1466 = vadd.f32 %v1338, 1.0
        %v1467 = vadd.f32 %v1339, 1.0
        %v1468 = vadd.f32 %v1340, 1.0
        %v1469 = vadd.f32 %v1341, 1.0
        %v1470 = vadd.f32 %v1342, 1.0
        %v1471 = vadd.f32 %v1343, 1.0
        %v1472 = vmul.f32 %v960, %v1344
        %v1473 = vmul.f32 %v961, %v1345
        %v1474 = vmul.f32 %v962, %v1346
        %v1475 = vmul.f32 %v963, %v1347
        %v1476 = vmul.f32 %v964, %v1348
        %v1477 = vmul.f32 %v965, %v1349
        %v1478 = vmul.f32 %v966, %v1350
        %v1479 = vmul.f32 %v967, %v1351
        %v1480 = vmul.f32 %v968, %v1352
        %v1481 = vmul.f32 %v969, %v1353
        %v1482 = vmul.f32 %v970, %v1354
        %v1483 = vmul.f32 %v971, %v1355
        %v1484 = vmul.f32 %v972, %v1356
        %v1485 = vmul.f32 %v973, %v1357
        %v1486 = vmul.f32 %v974, %v1358
        %v1487 = vmul.f32 %v975, %v1359
        %v1488 = vmul.f32 %v976, %v1360
        %v1489 = vmul.f32 %v977, %v1361
        %v1490 = vmul.f32 %v978, %v1362
        %v1491 = vmul.f32 %v979, %v1363
        %v1492 = vmul.f32 %v980, %v1364
        %v1493 = vmul.f32 %v981, %v1365
        %v1494 = vmul.f32 %v982, %v1366
        %v1495 = vmul.f32 %v983, %v1367
        %v1496 = vmul.f32 %v984, %v1368
        %v1497 = vmul.f32 %v985, %v1369
        %v1498 = vmul.f32 %v986, %v1370
        %v1499 = vmul.f32 %v987, %v1371
        %v1500 = vmul.f32 %v988, %v1372
        %v1501 = vmul.f32 %v989, %v1373
        %v1502 = vmul.f32 %v990, %v1374
        %v1503 = vmul.f32 %v991, %v1375
        %v1504 = vmul.f32 %v992, %v1376
        %v1505 = vmul.f32 %v993, %v1377
        %v1506 = vmul.f32 %v994, %v1378
        %v1507 = vmul.f32 %v995, %v1379
        %v1508 = vmul.f32 %v996, %v1380
        %v1509 = vmul.f32 %v997, %v1381
        %v1510 = vmul.f32 %v998, %v1382
        %v1511 = vmul.f32 %v999, %v1383
        %v1512 = vmul.f32 %v1000, %v1384
        %v1513 = vmul.f32 %v1001, %v1385
        %v1514 = vmul.f32 %v1002, %v1386
        %v1515 = vmul.f32 %v1003, %v1387
        %v1516 = vmul.f32 %v1004, %v1388
        %v1517 = vmul.f32 %v1005, %v1389
        %v1518 = vmul.f32 %v1006, %v1390
        %v1519 = vmul.f32 %v1007, %v1391
        %v1520 = vmul.f32 %v1008, %v1392
        %v1521 = vmul.f32 %v1009, %v1393
        %v1522 = vmul.f32 %v1010, %v1394
        %v1523 = vmul.f32 %v1011, %v1395
        %v1524 = vmul.f32 %v1012, %v1396
        %v1525 = vmul.f32 %v1013, %v1397
        %v1526 = vmul.f32 %v1014, %v1398
        %v1527 = vmul.f32 %v1015, %v1399
        %v1528 = vmul.f32 %v1016, %v1400
        %v1529 = vmul.f32 %v1017, %v1401
        %v1530 = vmul.f32 %v1018, %v1402
        %v1531 = vmul.f32 %v1019, %v1403
        %v1532 = vmul.f32 %v1020, %v1404
        %v1533 = vmul.f32 %v1021, %v1405
        %v1534 = vmul.f32 %v1022, %v1406
        %v1535 = vmul.f32 %v1023, %v1407
        %v1536 = vmul.f32 %v1024, %v1408
        %v1537 = vmul.f32 %v1025, %v1409
        %v1538 = vmul.f32 %v1026, %v1410
        %v1539 = vmul.f32 %v1027, %v1411
        %v1540 = vmul.f32 %v1028, %v1412
        %v1541 = vmul.f32 %v1029, %v1413
        %v1542 = vmul.f32 %v1030, %v1414
        %v1543 = vmul.f32 %v1031, %v1415
        %v1544 = vmul.f32 %v1032, %v1416
        %v1545 = vmul.f32 %v1033, %v1417
        %v1546 = vmul.f32 %v1034, %v1418
        %v1547 = vmul.f32 %v1035, %v1419
        %v1548 = vmul.f32 %v1036, %v1420
        %v1549 = vmul.f32 %v1037, %v1421
        %v1550 = vmul.f32 %v1038, %v1422
        %v1551 = vmul.f32 %v1039, %v1423
        %v1552 = vmul.f32 %v1040, %v1424
        %v1553 = vmul.f32 %v1041, %v1425
        %v1554 = vmul.f32 %v1042, %v1426
        %v1555 = vmul.f32 %v1043, %v1427
        %v1556 = vmul.f32 %v1044, %v1428
        %v1557 = vmul.f32 %v1045, %v1429
        %v1558 = vmul.f32 %v1046, %v1430
        %v1559 = vmul.f32 %v1047, %v1431
        %v1560 = vmul.f32 %v1048, %v1432
        %v1561 = vmul.f32 %v1049, %v1433
        %v1562 = vmul.f32 %v1050, %v1434
        %v1563 = vmul.f32 %v1051, %v1435
        %v1564 = vmul.f32 %v1052, %v1436
        %v1565 = vmul.f32 %v1053, %v1437
        %v1566 = vmul.f32 %v1054, %v1438
        %v1567 = vmul.f32 %v1055, %v1439
        %v1568 = vmul.f32 %v1056, %v1440
        %v1569 = vmul.f32 %v1057, %v1441
        %v1570 = vmul.f32 %v1058, %v1442
        %v1571 = vmul.f32 %v1059, %v1443
        %v1572 = vmul.f32 %v1060, %v1444
        %v1573 = vmul.f32 %v1061, %v1445
        %v1574 = vmul.f32 %v1062, %v1446
        %v1575 = vmul.f32 %v1063, %v1447
        %v1576 = vmul.f32 %v1064, %v1448
        %v1577 = vmul.f32 %v1065, %v1449
        %v1578 = vmul.f32 %v1066, %v1450
        %v1579 = vmul.f32 %v1067, %v1451
        %v1580 = vmul.f32 %v1068, %v1452
        %v1581 = vmul.f32 %v1069, %v1453
        %v1582 = vmul.f32 %v1070, %v1454
        %v1583 = vmul.f32 %v1071, %v1455
        %v1584 = vmul.f32 %v1072, %v1456
        %v1585 = vmul.f32 %v1073, %v1457
        %v1586 = vmul.f32 %v1074, %v1458
        %v1587 = vmul.f32 %v1075, %v1459
        %v1588 = vmul.f32 %v1076, %v1460
        %v1589 = vmul.f32 %v1077, %v1461
        %v1590 = vmul.f32 %v1078, %v1462
        %v1591 = vmul.f32 %v1079, %v1463
        %v1592 = vmul.f32 %v1080, %v1464
        %v1593 = vmul.f32 %v1081, %v1465
        %v1594 = vmul.f32 %v1082, %v1466
        %v1595 = vmul.f32 %v1083, %v1467
        %v1596 = vmul.f32 %v1084, %v1468
        %v1597 = vmul.f32 %v1085, %v1469
        %v1598 = vmul.f32 %v1086, %v1470
        %v1599 = vmul.f32 %v1087, %v1471
        %v1600 = vtanh.pop %v1472
        %v1601 = vtanh.pop %v1473
        %v1602 = vtanh.pop %v1474
        %v1603 = vtanh.pop %v1475
        %v1604 = vtanh.pop %v1476
        %v1605 = vtanh.pop %v1477
        %v1606 = vtanh.pop %v1478
        %v1607 = vtanh.pop %v1479
        %v1608 = vtanh.pop %v1480
        %v1609 = vtanh.pop %v1481
        %v1610 = vtanh.pop %v1482
        %v1611 = vtanh.pop %v1483
        %v1612 = vtanh.pop %v1484
        %v1613 = vtanh.pop %v1485
        %v1614 = vtanh.pop %v1486
        %v1615 = vtanh.pop %v1487
        %v1616 = vtanh.pop %v1488
        %v1617 = vtanh.pop %v1489
        %v1618 = vtanh.pop %v1490
        %v1619 = vtanh.pop %v1491
        %v1620 = vtanh.pop %v1492
        %v1621 = vtanh.pop %v1493
        %v1622 = vtanh.pop %v1494
        %v1623 = vtanh.pop %v1495
        %v1624 = vtanh.pop %v1496
        %v1625 = vtanh.pop %v1497
        %v1626 = vtanh.pop %v1498
        %v1627 = vtanh.pop %v1499
        %v1628 = vtanh.pop %v1500
        %v1629 = vtanh.pop %v1501
        %v1630 = vtanh.pop %v1502
        %v1631 = vtanh.pop %v1503
        %v1632 = vtanh.pop %v1504
        %v1633 = vtanh.pop %v1505
        %v1634 = vtanh.pop %v1506
        %v1635 = vtanh.pop %v1507
        %v1636 = vtanh.pop %v1508
        %v1637 = vtanh.pop %v1509
        %v1638 = vtanh.pop %v1510
        %v1639 = vtanh.pop %v1511
        %v1640 = vtanh.pop %v1512
        %v1641 = vtanh.pop %v1513
        %v1642 = vtanh.pop %v1514
        %v1643 = vtanh.pop %v1515
        %v1644 = vtanh.pop %v1516
        %v1645 = vtanh.pop %v1517
        %v1646 = vtanh.pop %v1518
        %v1647 = vtanh.pop %v1519
        %v1648 = vtanh.pop %v1520
        %v1649 = vtanh.pop %v1521
        %v1650 = vtanh.pop %v1522
        %v1651 = vtanh.pop %v1523
        %v1652 = vtanh.pop %v1524
        %v1653 = vtanh.pop %v1525
        %v1654 = vtanh.pop %v1526
        %v1655 = vtanh.pop %v1527
        %v1656 = vtanh.pop %v1528
        %v1657 = vtanh.pop %v1529
        %v1658 = vtanh.pop %v1530
        %v1659 = vtanh.pop %v1531
        %v1660 = vtanh.pop %v1532
        %v1661 = vtanh.pop %v1533
        %v1662 = vtanh.pop %v1534
        %v1663 = vtanh.pop %v1535
        %v1664 = vtanh.pop %v1536
        %v1665 = vtanh.pop %v1537
        %v1666 = vtanh.pop %v1538
        %v1667 = vtanh.pop %v1539
        %v1668 = vtanh.pop %v1540
        %v1669 = vtanh.pop %v1541
        %v1670 = vtanh.pop %v1542
        %v1671 = vtanh.pop %v1543
        %v1672 = vtanh.pop %v1544
        %v1673 = vtanh.pop %v1545
        %v1674 = vtanh.pop %v1546
        %v1675 = vtanh.pop %v1547
        %v1676 = vtanh.pop %v1548
        %v1677 = vtanh.pop %v1549
        %v1678 = vtanh.pop %v1550
        %v1679 = vtanh.pop %v1551
        %v1680 = vtanh.pop %v1552
        %v1681 = vtanh.pop %v1553
        %v1682 = vtanh.pop %v1554
        %v1683 = vtanh.pop %v1555
        %v1684 = vtanh.pop %v1556
        %v1685 = vtanh.pop %v1557
        %v1686 = vtanh.pop %v1558
        %v1687 = vtanh.pop %v1559
        %v1688 = vtanh.pop %v1560
        %v1689 = vtanh.pop %v1561
        %v1690 = vtanh.pop %v1562
        %v1691 = vtanh.pop %v1563
        %v1692 = vtanh.pop %v1564
        %v1693 = vtanh.pop %v1565
        %v1694 = vtanh.pop %v1566
        %v1695 = vtanh.pop %v1567
        %v1696 = vtanh.pop %v1568
        %v1697 = vtanh.pop %v1569
        %v1698 = vtanh.pop %v1570
        %v1699 = vtanh.pop %v1571
        %v1700 = vtanh.pop %v1572
        %v1701 = vtanh.pop %v1573
        %v1702 = vtanh.pop %v1574
        %v1703 = vtanh.pop %v1575
        %v1704 = vtanh.pop %v1576
        %v1705 = vtanh.pop %v1577
        %v1706 = vtanh.pop %v1578
        %v1707 = vtanh.pop %v1579
        %v1708 = vtanh.pop %v1580
        %v1709 = vtanh.pop %v1581
        %v1710 = vtanh.pop %v1582
        %v1711 = vtanh.pop %v1583
        %v1712 = vtanh.pop %v1584
        %v1713 = vtanh.pop %v1585
        %v1714 = vtanh.pop %v1586
        %v1715 = vtanh.pop %v1587
        %v1716 = vtanh.pop %v1588
        %v1717 = vtanh.pop %v1589
        %v1718 = vtanh.pop %v1590
        %v1719 = vtanh.pop %v1591
        %v1720 = vtanh.pop %v1592
        %v1721 = vtanh.pop %v1593
        %v1722 = vtanh.pop %v1594
        %v1723 = vtanh.pop %v1595
        %v1724 = vtanh.pop %v1596
        %v1725 = vtanh.pop %v1597
        %v1726 = vtanh.pop %v1598
        %v1727 = vtanh.pop %v1599
        %v1728 = vadd.f32 %v1600, 1.0
        %v1729 = vadd.f32 %v1601, 1.0
        %v1730 = vadd.f32 %v1602, 1.0
        %v1731 = vadd.f32 %v1603, 1.0
        %v1732 = vadd.f32 %v1604, 1.0
        %v1733 = vadd.f32 %v1605, 1.0
        %v1734 = vadd.f32 %v1606, 1.0
        %v1735 = vadd.f32 %v1607, 1.0
        %v1736 = vadd.f32 %v1608, 1.0
        %v1737 = vadd.f32 %v1609, 1.0
        %v1738 = vadd.f32 %v1610, 1.0
        %v1739 = vadd.f32 %v1611, 1.0
        %v1740 = vadd.f32 %v1612, 1.0
        %v1741 = vadd.f32 %v1613, 1.0
        %v1742 = vadd.f32 %v1614, 1.0
        %v1743 = vadd.f32 %v1615, 1.0
        %v1744 = vadd.f32 %v1616, 1.0
        %v1745 = vadd.f32 %v1617, 1.0
        %v1746 = vadd.f32 %v1618, 1.0
        %v1747 = vadd.f32 %v1619, 1.0
        %v1748 = vadd.f32 %v1620, 1.0
        %v1749 = vadd.f32 %v1621, 1.0
        %v1750 = vadd.f32 %v1622, 1.0
        %v1751 = vadd.f32 %v1623, 1.0
        %v1752 = vadd.f32 %v1624, 1.0
        %v1753 = vadd.f32 %v1625, 1.0
        %v1754 = vadd.f32 %v1626, 1.0
        %v1755 = vadd.f32 %v1627, 1.0
        %v1756 = vadd.f32 %v1628, 1.0
        %v1757 = vadd.f32 %v1629, 1.0
        %v1758 = vadd.f32 %v1630, 1.0
        %v1759 = vadd.f32 %v1631, 1.0
        %v1760 = vadd.f32 %v1632, 1.0
        %v1761 = vadd.f32 %v1633, 1.0
        %v1762 = vadd.f32 %v1634, 1.0
        %v1763 = vadd.f32 %v1635, 1.0
        %v1764 = vadd.f32 %v1636, 1.0
        %v1765 = vadd.f32 %v1637, 1.0
        %v1766 = vadd.f32 %v1638, 1.0
        %v1767 = vadd.f32 %v1639, 1.0
        %v1768 = vadd.f32 %v1640, 1.0
        %v1769 = vadd.f32 %v1641, 1.0
        %v1770 = vadd.f32 %v1642, 1.0
        %v1771 = vadd.f32 %v1643, 1.0
        %v1772 = vadd.f32 %v1644, 1.0
        %v1773 = vadd.f32 %v1645, 1.0
        %v1774 = vadd.f32 %v1646, 1.0
        %v1775 = vadd.f32 %v1647, 1.0
        %v1776 = vadd.f32 %v1648, 1.0
        %v1777 = vadd.f32 %v1649, 1.0
        %v1778 = vadd.f32 %v1650, 1.0
        %v1779 = vadd.f32 %v1651, 1.0
        %v1780 = vadd.f32 %v1652, 1.0
        %v1781 = vadd.f32 %v1653, 1.0
        %v1782 = vadd.f32 %v1654, 1.0
        %v1783 = vadd.f32 %v1655, 1.0
        %v1784 = vadd.f32 %v1656, 1.0
        %v1785 = vadd.f32 %v1657, 1.0
        %v1786 = vadd.f32 %v1658, 1.0
        %v1787 = vadd.f32 %v1659, 1.0
        %v1788 = vadd.f32 %v1660, 1.0
        %v1789 = vadd.f32 %v1661, 1.0
        %v1790 = vadd.f32 %v1662, 1.0
        %v1791 = vadd.f32 %v1663, 1.0
        %v1792 = vadd.f32 %v1664, 1.0
        %v1793 = vadd.f32 %v1665, 1.0
        %v1794 = vadd.f32 %v1666, 1.0
        %v1795 = vadd.f32 %v1667, 1.0
        %v1796 = vadd.f32 %v1668, 1.0
        %v1797 = vadd.f32 %v1669, 1.0
        %v1798 = vadd.f32 %v1670, 1.0
        %v1799 = vadd.f32 %v1671, 1.0
        %v1800 = vadd.f32 %v1672, 1.0
        %v1801 = vadd.f32 %v1673, 1.0
        %v1802 = vadd.f32 %v1674, 1.0
        %v1803 = vadd.f32 %v1675, 1.0
        %v1804 = vadd.f32 %v1676, 1.0
        %v1805 = vadd.f32 %v1677, 1.0
        %v1806 = vadd.f32 %v1678, 1.0
        %v1807 = vadd.f32 %v1679, 1.0
        %v1808 = vadd.f32 %v1680, 1.0
        %v1809 = vadd.f32 %v1681, 1.0
        %v1810 = vadd.f32 %v1682, 1.0
        %v1811 = vadd.f32 %v1683, 1.0
        %v1812 = vadd.f32 %v1684, 1.0
        %v1813 = vadd.f32 %v1685, 1.0
        %v1814 = vadd.f32 %v1686, 1.0
        %v1815 = vadd.f32 %v1687, 1.0
        %v1816 = vadd.f32 %v1688, 1.0
        %v1817 = vadd.f32 %v1689, 1.0
        %v1818 = vadd.f32 %v1690, 1.0
        %v1819 = vadd.f32 %v1691, 1.0
        %v1820 = vadd.f32 %v1692, 1.0
        %v1821 = vadd.f32 %v1693, 1.0
        %v1822 = vadd.f32 %v1694, 1.0
        %v1823 = vadd.f32 %v1695, 1.0
        %v1824 = vadd.f32 %v1696, 1.0
        %v1825 = vadd.f32 %v1697, 1.0
        %v1826 = vadd.f32 %v1698, 1.0
        %v1827 = vadd.f32 %v1699, 1.0
        %v1828 = vadd.f32 %v1700, 1.0
        %v1829 = vadd.f32 %v1701, 1.0
        %v1830 = vadd.f32 %v1702, 1.0
        %v1831 = vadd.f32 %v1703, 1.0
        %v1832 = vadd.f32 %v1704, 1.0
        %v1833 = vadd.f32 %v1705, 1.0
        %v1834 = vadd.f32 %v1706, 1.0
        %v1835 = vadd.f32 %v1707, 1.0
        %v1836 = vadd.f32 %v1708, 1.0
        %v1837 = vadd.f32 %v1709, 1.0
        %v1838 = vadd.f32 %v1710, 1.0
        %v1839 = vadd.f32 %v1711, 1.0
        %v1840 = vadd.f32 %v1712, 1.0
        %v1841 = vadd.f32 %v1713, 1.0
        %v1842 = vadd.f32 %v1714, 1.0
        %v1843 = vadd.f32 %v1715, 1.0
        %v1844 = vadd.f32 %v1716, 1.0
        %v1845 = vadd.f32 %v1717, 1.0
        %v1846 = vadd.f32 %v1718, 1.0
        %v1847 = vadd.f32 %v1719, 1.0
        %v1848 = vadd.f32 %v1720, 1.0
        %v1849 = vadd.f32 %v1721, 1.0
        %v1850 = vadd.f32 %v1722, 1.0
        %v1851 = vadd.f32 %v1723, 1.0
        %v1852 = vadd.f32 %v1724, 1.0
        %v1853 = vadd.f32 %v1725, 1.0
        %v1854 = vadd.f32 %v1726, 1.0
        %v1855 = vadd.f32 %v1727, 1.0
        %v1856 = vmul.f32 %v832, %v1728
        %v1857 = vmul.f32 %v833, %v1729
        %v1858 = vmul.f32 %v834, %v1730
        %v1859 = vmul.f32 %v835, %v1731
        %v1860 = vmul.f32 %v836, %v1732
        %v1861 = vmul.f32 %v837, %v1733
        %v1862 = vmul.f32 %v838, %v1734
        %v1863 = vmul.f32 %v839, %v1735
        %v1864 = vmul.f32 %v840, %v1736
        %v1865 = vmul.f32 %v841, %v1737
        %v1866 = vmul.f32 %v842, %v1738
        %v1867 = vmul.f32 %v843, %v1739
        %v1868 = vmul.f32 %v844, %v1740
        %v1869 = vmul.f32 %v845, %v1741
        %v1870 = vmul.f32 %v846, %v1742
        %v1871 = vmul.f32 %v847, %v1743
        %v1872 = vmul.f32 %v848, %v1744
        %v1873 = vmul.f32 %v849, %v1745
        %v1874 = vmul.f32 %v850, %v1746
        %v1875 = vmul.f32 %v851, %v1747
        %v1876 = vmul.f32 %v852, %v1748
        %v1877 = vmul.f32 %v853, %v1749
        %v1878 = vmul.f32 %v854, %v1750
        %v1879 = vmul.f32 %v855, %v1751
        %v1880 = vmul.f32 %v856, %v1752
        %v1881 = vmul.f32 %v857, %v1753
        %v1882 = vmul.f32 %v858, %v1754
        %v1883 = vmul.f32 %v859, %v1755
        %v1884 = vmul.f32 %v860, %v1756
        %v1885 = vmul.f32 %v861, %v1757
        %v1886 = vmul.f32 %v862, %v1758
        %v1887 = vmul.f32 %v863, %v1759
        %v1888 = vmul.f32 %v864, %v1760
        %v1889 = vmul.f32 %v865, %v1761
        %v1890 = vmul.f32 %v866, %v1762
        %v1891 = vmul.f32 %v867, %v1763
        %v1892 = vmul.f32 %v868, %v1764
        %v1893 = vmul.f32 %v869, %v1765
        %v1894 = vmul.f32 %v870, %v1766
        %v1895 = vmul.f32 %v871, %v1767
        %v1896 = vmul.f32 %v872, %v1768
        %v1897 = vmul.f32 %v873, %v1769
        %v1898 = vmul.f32 %v874, %v1770
        %v1899 = vmul.f32 %v875, %v1771
        %v1900 = vmul.f32 %v876, %v1772
        %v1901 = vmul.f32 %v877, %v1773
        %v1902 = vmul.f32 %v878, %v1774
        %v1903 = vmul.f32 %v879, %v1775
        %v1904 = vmul.f32 %v880, %v1776
        %v1905 = vmul.f32 %v881, %v1777
        %v1906 = vmul.f32 %v882, %v1778
        %v1907 = vmul.f32 %v883, %v1779
        %v1908 = vmul.f32 %v884, %v1780
        %v1909 = vmul.f32 %v885, %v1781
        %v1910 = vmul.f32 %v886, %v1782
        %v1911 = vmul.f32 %v887, %v1783
        %v1912 = vmul.f32 %v888, %v1784
        %v1913 = vmul.f32 %v889, %v1785
        %v1914 = vmul.f32 %v890, %v1786
        %v1915 = vmul.f32 %v891, %v1787
        %v1916 = vmul.f32 %v892, %v1788
        %v1917 = vmul.f32 %v893, %v1789
        %v1918 = vmul.f32 %v894, %v1790
        %v1919 = vmul.f32 %v895, %v1791
        %v1920 = vmul.f32 %v896, %v1792
        %v1921 = vmul.f32 %v897, %v1793
        %v1922 = vmul.f32 %v898, %v1794
        %v1923 = vmul.f32 %v899, %v1795
        %v1924 = vmul.f32 %v900, %v1796
        %v1925 = vmul.f32 %v901, %v1797
        %v1926 = vmul.f32 %v902, %v1798
        %v1927 = vmul.f32 %v903, %v1799
        %v1928 = vmul.f32 %v904, %v1800
        %v1929 = vmul.f32 %v905, %v1801
        %v1930 = vmul.f32 %v906, %v1802
        %v1931 = vmul.f32 %v907, %v1803
        %v1932 = vmul.f32 %v908, %v1804
        %v1933 = vmul.f32 %v909, %v1805
        %v1934 = vmul.f32 %v910, %v1806
        %v1935 = vmul.f32 %v911, %v1807
        %v1936 = vmul.f32 %v912, %v1808
        %v1937 = vmul.f32 %v913, %v1809
        %v1938 = vmul.f32 %v914, %v1810
        %v1939 = vmul.f32 %v915, %v1811
        %v1940 = vmul.f32 %v916, %v1812
        %v1941 = vmul.f32 %v917, %v1813
        %v1942 = vmul.f32 %v918, %v1814
        %v1943 = vmul.f32 %v919, %v1815
        %v1944 = vmul.f32 %v920, %v1816
        %v1945 = vmul.f32 %v921, %v1817
        %v1946 = vmul.f32 %v922, %v1818
        %v1947 = vmul.f32 %v923, %v1819
        %v1948 = vmul.f32 %v924, %v1820
        %v1949 = vmul.f32 %v925, %v1821
        %v1950 = vmul.f32 %v926, %v1822
        %v1951 = vmul.f32 %v927, %v1823
        %v1952 = vmul.f32 %v928, %v1824
        %v1953 = vmul.f32 %v929, %v1825
        %v1954 = vmul.f32 %v930, %v1826
        %v1955 = vmul.f32 %v931, %v1827
        %v1956 = vmul.f32 %v932, %v1828
        %v1957 = vmul.f32 %v933, %v1829
        %v1958 = vmul.f32 %v934, %v1830
        %v1959 = vmul.f32 %v935, %v1831
        %v1960 = vmul.f32 %v936, %v1832
        %v1961 = vmul.f32 %v937, %v1833
        %v1962 = vmul.f32 %v938, %v1834
        %v1963 = vmul.f32 %v939, %v1835
        %v1964 = vmul.f32 %v940, %v1836
        %v1965 = vmul.f32 %v941, %v1837
        %v1966 = vmul.f32 %v942, %v1838
        %v1967 = vmul.f32 %v943, %v1839
        %v1968 = vmul.f32 %v944, %v1840
        %v1969 = vmul.f32 %v945, %v1841
        %v1970 = vmul.f32 %v946, %v1842
        %v1971 = vmul.f32 %v947, %v1843
        %v1972 = vmul.f32 %v948, %v1844
        %v1973 = vmul.f32 %v949, %v1845
        %v1974 = vmul.f32 %v950, %v1846
        %v1975 = vmul.f32 %v951, %v1847
        %v1976 = vmul.f32 %v952, %v1848
        %v1977 = vmul.f32 %v953, %v1849
        %v1978 = vmul.f32 %v954, %v1850
        %v1979 = vmul.f32 %v955, %v1851
        %v1980 = vmul.f32 %v956, %v1852
        %v1981 = vmul.f32 %v957, %v1853
        %v1982 = vmul.f32 %v958, %v1854
        %v1983 = vmul.f32 %v959, %v1855
        %v1984 = vpack.c.bf16 %v1858, %v1856
        %v1985 = vpack.c.bf16 %v1859, %v1857
        %v1986 = vpack.c.bf16 %v1862, %v1860
        %v1987 = vpack.c.bf16 %v1863, %v1861
        %v1988 = vpack.c.bf16 %v1866, %v1864
        %v1989 = vpack.c.bf16 %v1867, %v1865
        %v1990 = vpack.c.bf16 %v1870, %v1868
        %v1991 = vpack.c.bf16 %v1871, %v1869
        %v1992 = vpack.c.bf16 %v1874, %v1872
        %v1993 = vpack.c.bf16 %v1875, %v1873
        %v1994 = vpack.c.bf16 %v1878, %v1876
        %v1995 = vpack.c.bf16 %v1879, %v1877
        %v1996 = vpack.c.bf16 %v1882, %v1880
        %v1997 = vpack.c.bf16 %v1883, %v1881
        %v1998 = vpack.c.bf16 %v1886, %v1884
        %v1999 = vpack.c.bf16 %v1887, %v1885
        %v2000 = vpack.c.bf16 %v1890, %v1888
        %v2001 = vpack.c.bf16 %v1891, %v1889
        %v2002 = vpack.c.bf16 %v1894, %v1892
        %v2003 = vpack.c.bf16 %v1895, %v1893
        %v2004 = vpack.c.bf16 %v1898, %v1896
        %v2005 = vpack.c.bf16 %v1899, %v1897
        %v2006 = vpack.c.bf16 %v1902, %v1900
        %v2007 = vpack.c.bf16 %v1903, %v1901
        %v2008 = vpack.c.bf16 %v1906, %v1904
        %v2009 = vpack.c.bf16 %v1907, %v1905
        %v2010 = vpack.c.bf16 %v1910, %v1908
        %v2011 = vpack.c.bf16 %v1911, %v1909
        %v2012 = vpack.c.bf16 %v1914, %v1912
        %v2013 = vpack.c.bf16 %v1915, %v1913
        %v2014 = vpack.c.bf16 %v1918, %v1916
        %v2015 = vpack.c.bf16 %v1919, %v1917
        %v2016 = vpack.c.bf16 %v1922, %v1920
        %v2017 = vpack.c.bf16 %v1923, %v1921
        %v2018 = vpack.c.bf16 %v1926, %v1924
        %v2019 = vpack.c.bf16 %v1927, %v1925
        %v2020 = vpack.c.bf16 %v1930, %v1928
        %v2021 = vpack.c.bf16 %v1931, %v1929
        %v2022 = vpack.c.bf16 %v1934, %v1932
        %v2023 = vpack.c.bf16 %v1935, %v1933
        %v2024 = vpack.c.bf16 %v1938, %v1936
        %v2025 = vpack.c.bf16 %v1939, %v1937
        %v2026 = vpack.c.bf16 %v1942, %v1940
        %v2027 = vpack.c.bf16 %v1943, %v1941
        %v2028 = vpack.c.bf16 %v1946, %v1944
        %v2029 = vpack.c.bf16 %v1947, %v1945
        %v2030 = vpack.c.bf16 %v1950, %v1948
        %v2031 = vpack.c.bf16 %v1951, %v1949
        %v2032 = vpack.c.bf16 %v1954, %v1952
        %v2033 = vpack.c.bf16 %v1955, %v1953
        %v2034 = vpack.c.bf16 %v1958, %v1956
        %v2035 = vpack.c.bf16 %v1959, %v1957
        %v2036 = vpack.c.bf16 %v1962, %v1960
        %v2037 = vpack.c.bf16 %v1963, %v1961
        %v2038 = vpack.c.bf16 %v1966, %v1964
        %v2039 = vpack.c.bf16 %v1967, %v1965
        %v2040 = vpack.c.bf16 %v1970, %v1968
        %v2041 = vpack.c.bf16 %v1971, %v1969
        %v2042 = vpack.c.bf16 %v1974, %v1972
        %v2043 = vpack.c.bf16 %v1975, %v1973
        %v2044 = vpack.c.bf16 %v1978, %v1976
        %v2045 = vpack.c.bf16 %v1979, %v1977
        %v2046 = vpack.c.bf16 %v1982, %v1980
        %v2047 = vpack.c.bf16 %v1983, %v1981
        %v2048 = vld [vmem:[#allocation7] sm:$0xf]
        %v2049 = vld [vmem:[#allocation7 + $0x4] sm:$0xf]
        %v2050 = vld [vmem:[#allocation7 + $0x8] sm:$0xf]
        %v2051 = vld [vmem:[#allocation7 + $0xc] sm:$0xf]
        %v2052 = vld [vmem:[#allocation7 + $0x10] sm:$0xf]
        %v2053 = vld [vmem:[#allocation7 + $0x14] sm:$0xf]
        %v2054 = vld [vmem:[#allocation7 + $0x18] sm:$0xf]
        %v2055 = vld [vmem:[#allocation7 + $0x1c] sm:$0xf]
        %v2056 = vld [vmem:[#allocation7 + $0x20] sm:$0xf]
        %v2057 = vld [vmem:[#allocation7 + $0x24] sm:$0xf]
        %v2058 = vld [vmem:[#allocation7 + $0x28] sm:$0xf]
        %v2059 = vld [vmem:[#allocation7 + $0x2c] sm:$0xf]
        %v2060 = vld [vmem:[#allocation7 + $0x30] sm:$0xf]
        %v2061 = vld [vmem:[#allocation7 + $0x34] sm:$0xf]
        %v2062 = vld [vmem:[#allocation7 + $0x38] sm:$0xf]
        %v2063 = vld [vmem:[#allocation7 + $0x3c] sm:$0xf]
        %v2064 = vld [vmem:[#allocation7 + $0x40] sm:$0xf]
        %v2065 = vld [vmem:[#allocation7 + $0x44] sm:$0xf]
        %v2066 = vld [vmem:[#allocation7 + $0x48] sm:$0xf]
        %v2067 = vld [vmem:[#allocation7 + $0x4c] sm:$0xf]
        %v2068 = vld [vmem:[#allocation7 + $0x50] sm:$0xf]
        %v2069 = vld [vmem:[#allocation7 + $0x54] sm:$0xf]
        %v2070 = vld [vmem:[#allocation7 + $0x58] sm:$0xf]
        %v2071 = vld [vmem:[#allocation7 + $0x5c] sm:$0xf]
        %v2072 = vld [vmem:[#allocation7 + $0x60] sm:$0xf]
        %v2073 = vld [vmem:[#allocation7 + $0x64] sm:$0xf]
        %v2074 = vld [vmem:[#allocation7 + $0x68] sm:$0xf]
        %v2075 = vld [vmem:[#allocation7 + $0x6c] sm:$0xf]
        %v2076 = vld [vmem:[#allocation7 + $0x70] sm:$0xf]
        %v2077 = vld [vmem:[#allocation7 + $0x74] sm:$0xf]
        %v2078 = vld [vmem:[#allocation7 + $0x78] sm:$0xf]
        %v2079 = vld [vmem:[#allocation7 + $0x7c] sm:$0xf]
        %v2080 = vld [vmem:[%s4] sm:$0x1]
        %v2082 = vlaneseq
        %v2083 = vshrl.u32 %v2082, 7
        %v2084 = vsub.s32 0, %v2083
        %v2085 = vrot.slane %v2080, %v2084
        %v2119 = vunpack.c.l.b16 %v2048
        %v2120 = vunpack.c.l.b16 %v2049
        %v2121 = vunpack.c.l.b16 %v2050
        %v2122 = vunpack.c.l.b16 %v2051
        %v2123 = vunpack.c.l.b16 %v2052
        %v2124 = vunpack.c.l.b16 %v2053
        %v2125 = vunpack.c.l.b16 %v2054
        %v2126 = vunpack.c.l.b16 %v2055
        %v2127 = vunpack.c.l.b16 %v2056
        %v2128 = vunpack.c.l.b16 %v2057
        %v2129 = vunpack.c.l.b16 %v2058
        %v2130 = vunpack.c.l.b16 %v2059
        %v2131 = vunpack.c.l.b16 %v2060
        %v2132 = vunpack.c.l.b16 %v2061
        %v2133 = vunpack.c.l.b16 %v2062
        %v2134 = vunpack.c.l.b16 %v2063
        %v2135 = vunpack.c.l.b16 %v2064
        %v2136 = vunpack.c.l.b16 %v2065
        %v2137 = vunpack.c.l.b16 %v2066
        %v2138 = vunpack.c.l.b16 %v2067
        %v2139 = vunpack.c.l.b16 %v2068
        %v2140 = vunpack.c.l.b16 %v2069
        %v2141 = vunpack.c.l.b16 %v2070
        %v2142 = vunpack.c.l.b16 %v2071
        %v2143 = vunpack.c.l.b16 %v2072
        %v2144 = vunpack.c.l.b16 %v2073
        %v2145 = vunpack.c.l.b16 %v2074
        %v2146 = vunpack.c.l.b16 %v2075
        %v2147 = vunpack.c.l.b16 %v2076
        %v2148 = vunpack.c.l.b16 %v2077
        %v2149 = vunpack.c.l.b16 %v2078
        %v2150 = vunpack.c.l.b16 %v2079
        %v2151 = vpack.c.b16 %v2120, %v2119
        %v2152 = vpack.c.b16 %v2122, %v2121
        %v2153 = vpack.c.b16 %v2124, %v2123
        %v2154 = vpack.c.b16 %v2126, %v2125
        %v2155 = vpack.c.b16 %v2128, %v2127
        %v2156 = vpack.c.b16 %v2130, %v2129
        %v2157 = vpack.c.b16 %v2132, %v2131
        %v2158 = vpack.c.b16 %v2134, %v2133
        %v2159 = vpack.c.b16 %v2136, %v2135
        %v2160 = vpack.c.b16 %v2138, %v2137
        %v2161 = vpack.c.b16 %v2140, %v2139
        %v2162 = vpack.c.b16 %v2142, %v2141
        %v2163 = vpack.c.b16 %v2144, %v2143
        %v2164 = vpack.c.b16 %v2146, %v2145
        %v2165 = vpack.c.b16 %v2148, %v2147
        %v2166 = vpack.c.b16 %v2150, %v2149
        %2183 = vmatprep.subr.bf16.mxu0 0
        %2184 = vmatpush1.bf16.msra.mxu0 %v2151
        %2185 = vmatprep.subr.bf16.mxu0 0
        %2186 = vmatpush1.bf16.msra.mxu0 %v2152
        %2187 = vmatprep.subr.bf16.mxu0 0
        %2188 = vmatpush1.bf16.msra.mxu0 %v2153
        %2189 = vmatprep.subr.bf16.mxu0 0
        %2190 = vmatpush1.bf16.msra.mxu0 %v2154
        %2191 = vmatprep.subr.bf16.mxu0 0
        %2192 = vmatpush1.bf16.msra.mxu0 %v2155
        %2193 = vmatprep.subr.bf16.mxu0 0
        %2194 = vmatpush1.bf16.msra.mxu0 %v2156
        %2195 = vmatprep.subr.bf16.mxu0 0
        %2196 = vmatpush1.bf16.msra.mxu0 %v2157
        %2197 = vmatprep.subr.bf16.mxu0 0
        %2198 = vmatpush1.bf16.msra.mxu0 %v2158
        %2199 = vmatprep.subr.bf16.mxu0 0
        %2200 = vmatpush1.bf16.msra.mxu0 %v2159
        %2201 = vmatprep.subr.bf16.mxu0 0
        %2202 = vmatpush1.bf16.msra.mxu0 %v2160
        %2203 = vmatprep.subr.bf16.mxu0 0
        %2204 = vmatpush1.bf16.msra.mxu0 %v2161
        %2205 = vmatprep.subr.bf16.mxu0 0
        %2206 = vmatpush1.bf16.msra.mxu0 %v2162
        %2207 = vmatprep.subr.bf16.mxu0 0
        %2208 = vmatpush1.bf16.msra.mxu0 %v2163
        %2209 = vmatprep.subr.bf16.mxu0 0
        %2210 = vmatpush1.bf16.msra.mxu0 %v2164
        %2211 = vmatprep.subr.bf16.mxu0 0
        %2212 = vmatpush1.bf16.msra.mxu0 %v2165
        %2213 = vmatprep.subr.bf16.mxu0 0
        %2214 = vmatpush1.bf16.msra.mxu0 %v2166
        %2215 = vmatprep.mubr.bf16.mxu0 %v1985
        %2216 = vmatmul.mubr.bf16.gmra.mrb[0].mxu0 %v1984
        %v2217 = vpop.f32.mrb[0].mxu0
        %v2218 = vadd.f32 %v2085, %v2217
        %v2219 = vpop.f32.mrb[0].mxu0
        %v2220 = vpop.f32.mrb[0].mxu0
        %v2221 = vadd.f32 %v2085, %v2220
        %v2222 = vpop.f32.mrb[0].mxu0
        %2223 = vmatprep.mubr.bf16.mxu0 %v1987
        %2224 = vmatmul.mubr.bf16.gmra.mrb[0].mxu0 %v1986
        %v2225 = vpop.f32.mrb[0].mxu0
        %v2226 = vadd.f32 %v2085, %v2225
        %v2227 = vpop.f32.mrb[0].mxu0
        %v2228 = vpop.f32.mrb[0].mxu0
        %v2229 = vadd.f32 %v2085, %v2228
        %v2230 = vpop.f32.mrb[0].mxu0
        %2231 = vmatprep.mubr.bf16.mxu0 %v1989
        %2232 = vmatmul.mubr.bf16.gmra.mrb[0].mxu0 %v1988
        %v2233 = vpop.f32.mrb[0].mxu0
        %v2234 = vadd.f32 %v2085, %v2233
        %v2235 = vpop.f32.mrb[0].mxu0
        %v2236 = vpop.f32.mrb[0].mxu0
        %v2237 = vadd.f32 %v2085, %v2236
        %v2238 = vpop.f32.mrb[0].mxu0
        %2239 = vmatprep.mubr.bf16.mxu0 %v1991
        %2240 = vmatmul.mubr.bf16.gmra.mrb[0].mxu0 %v1990
        %v2241 = vpop.f32.mrb[0].mxu0
        %v2242 = vadd.f32 %v2085, %v2241
        %v2243 = vpop.f32.mrb[0].mxu0
        %v2244 = vpop.f32.mrb[0].mxu0
        %v2245 = vadd.f32 %v2085, %v2244
        %v2246 = vpop.f32.mrb[0].mxu0
        %2247 = vmatprep.mubr.bf16.mxu0 %v1993
        %2248 = vmatmul.mubr.bf16.gmra.mrb[0].mxu0 %v1992
        %v2249 = vpop.f32.mrb[0].mxu0
        %v2250 = vadd.f32 %v2085, %v2249
        %v2251 = vpop.f32.mrb[0].mxu0
        %v2252 = vpop.f32.mrb[0].mxu0
        %v2253 = vadd.f32 %v2085, %v2252
        %v2254 = vpop.f32.mrb[0].mxu0
        %2255 = vmatprep.mubr.bf16.mxu0 %v1995
        %2256 = vmatmul.mubr.bf16.gmra.mrb[0].mxu0 %v1994
        %v2257 = vpop.f32.mrb[0].mxu0
        %v2258 = vadd.f32 %v2085, %v2257
        %v2259 = vpop.f32.mrb[0].mxu0
        %v2260 = vpop.f32.mrb[0].mxu0
        %v2261 = vadd.f32 %v2085, %v2260
        %v2262 = vpop.f32.mrb[0].mxu0
        %2263 = vmatprep.mubr.bf16.mxu0 %v1997
        %2264 = vmatmul.mubr.bf16.gmra.mrb[0].mxu0 %v1996
        %v2265 = vpop.f32.mrb[0].mxu0
        %v2266 = vadd.f32 %v2085, %v2265
        %v2267 = vpop.f32.mrb[0].mxu0
        %v2268 = vpop.f32.mrb[0].mxu0
        %v2269 = vadd.f32 %v2085, %v2268
        %v2270 = vpop.f32.mrb[0].mxu0
        %2271 = vmatprep.mubr.bf16.mxu0 %v1999
        %2272 = vmatmul.mubr.bf16.gmra.mrb[0].mxu0 %v1998
        %v2273 = vpop.f32.mrb[0].mxu0
        %v2274 = vadd.f32 %v2085, %v2273
        %v2275 = vpop.f32.mrb[0].mxu0
        %v2276 = vpop.f32.mrb[0].mxu0
        %v2277 = vadd.f32 %v2085, %v2276
        %v2278 = vpop.f32.mrb[0].mxu0
        %2279 = vmatprep.mubr.bf16.mxu0 %v2001
        %2280 = vmatmul.mubr.bf16.gmra.mrb[0].mxu0 %v2000
        %v2281 = vpop.f32.mrb[0].mxu0
        %v2282 = vadd.f32 %v2085, %v2281
        %v2283 = vpop.f32.mrb[0].mxu0
        %v2284 = vpop.f32.mrb[0].mxu0
        %v2285 = vadd.f32 %v2085, %v2284
        %v2286 = vpop.f32.mrb[0].mxu0
        %2287 = vmatprep.mubr.bf16.mxu0 %v2003
        %2288 = vmatmul.mubr.bf16.gmra.mrb[0].mxu0 %v2002
        %v2289 = vpop.f32.mrb[0].mxu0
        %v2290 = vadd.f32 %v2085, %v2289
        %v2291 = vpop.f32.mrb[0].mxu0
        %v2292 = vpop.f32.mrb[0].mxu0
        %v2293 = vadd.f32 %v2085, %v2292
        %v2294 = vpop.f32.mrb[0].mxu0
        %2295 = vmatprep.mubr.bf16.mxu0 %v2005
        %2296 = vmatmul.mubr.bf16.gmra.mrb[0].mxu0 %v2004
        %v2297 = vpop.f32.mrb[0].mxu0
        %v2298 = vadd.f32 %v2085, %v2297
        %v2299 = vpop.f32.mrb[0].mxu0
        %v2300 = vpop.f32.mrb[0].mxu0
        %v2301 = vadd.f32 %v2085, %v2300
        %v2302 = vpop.f32.mrb[0].mxu0
        %2303 = vmatprep.mubr.bf16.mxu0 %v2007
        %2304 = vmatmul.mubr.bf16.gmra.mrb[0].mxu0 %v2006
        %v2305 = vpop.f32.mrb[0].mxu0
        %v2306 = vadd.f32 %v2085, %v2305
        %v2307 = vpop.f32.mrb[0].mxu0
        %v2308 = vpop.f32.mrb[0].mxu0
        %v2309 = vadd.f32 %v2085, %v2308
        %v2310 = vpop.f32.mrb[0].mxu0
        %2311 = vmatprep.mubr.bf16.mxu0 %v2009
        %2312 = vmatmul.mubr.bf16.gmra.mrb[0].mxu0 %v2008
        %v2313 = vpop.f32.mrb[0].mxu0
        %v2314 = vadd.f32 %v2085, %v2313
        %v2315 = vpop.f32.mrb[0].mxu0
        %v2316 = vpop.f32.mrb[0].mxu0
        %v2317 = vadd.f32 %v2085, %v2316
        %v2318 = vpop.f32.mrb[0].mxu0
        %2319 = vmatprep.mubr.bf16.mxu0 %v2011
        %2320 = vmatmul.mubr.bf16.gmra.mrb[0].mxu0 %v2010
        %v2321 = vpop.f32.mrb[0].mxu0
        %v2322 = vadd.f32 %v2085, %v2321
        %v2323 = vpop.f32.mrb[0].mxu0
        %v2324 = vpop.f32.mrb[0].mxu0
        %v2325 = vadd.f32 %v2085, %v2324
        %v2326 = vpop.f32.mrb[0].mxu0
        %2327 = vmatprep.mubr.bf16.mxu0 %v2013
        %2328 = vmatmul.mubr.bf16.gmra.mrb[0].mxu0 %v2012
        %v2329 = vpop.f32.mrb[0].mxu0
        %v2330 = vadd.f32 %v2085, %v2329
        %v2331 = vpop.f32.mrb[0].mxu0
        %v2332 = vpop.f32.mrb[0].mxu0
        %v2333 = vadd.f32 %v2085, %v2332
        %v2334 = vpop.f32.mrb[0].mxu0
        %2335 = vmatprep.mubr.bf16.mxu0 %v2015
        %2336 = vmatmul.mubr.bf16.gmra.mrb[0].mxu0 %v2014
        %v2337 = vpop.f32.mrb[0].mxu0
        %v2338 = vadd.f32 %v2085, %v2337
        %v2339 = vpop.f32.mrb[0].mxu0
        %v2340 = vpop.f32.mrb[0].mxu0
        %v2341 = vadd.f32 %v2085, %v2340
        %v2342 = vpop.f32.mrb[0].mxu0
        %2343 = vmatprep.mubr.bf16.mxu0 %v2017
        %2344 = vmatmul.mubr.bf16.gmra.mrb[0].mxu0 %v2016
        %v2345 = vpop.f32.mrb[0].mxu0
        %v2346 = vadd.f32 %v2085, %v2345
        %v2347 = vpop.f32.mrb[0].mxu0
        %v2348 = vpop.f32.mrb[0].mxu0
        %v2349 = vadd.f32 %v2085, %v2348
        %v2350 = vpop.f32.mrb[0].mxu0
        %2351 = vmatprep.mubr.bf16.mxu0 %v2019
        %2352 = vmatmul.mubr.bf16.gmra.mrb[0].mxu0 %v2018
        %v2353 = vpop.f32.mrb[0].mxu0
        %v2354 = vadd.f32 %v2085, %v2353
        %v2355 = vpop.f32.mrb[0].mxu0
        %v2356 = vpop.f32.mrb[0].mxu0
        %v2357 = vadd.f32 %v2085, %v2356
        %v2358 = vpop.f32.mrb[0].mxu0
        %2359 = vmatprep.mubr.bf16.mxu0 %v2021
        %2360 = vmatmul.mubr.bf16.gmra.mrb[0].mxu0 %v2020
        %v2361 = vpop.f32.mrb[0].mxu0
        %v2362 = vadd.f32 %v2085, %v2361
        %v2363 = vpop.f32.mrb[0].mxu0
        %v2364 = vpop.f32.mrb[0].mxu0
        %v2365 = vadd.f32 %v2085, %v2364
        %v2366 = vpop.f32.mrb[0].mxu0
        %2367 = vmatprep.mubr.bf16.mxu0 %v2023
        %2368 = vmatmul.mubr.bf16.gmra.mrb[0].mxu0 %v2022
        %v2369 = vpop.f32.mrb[0].mxu0
        %v2370 = vadd.f32 %v2085, %v2369
        %v2371 = vpop.f32.mrb[0].mxu0
        %v2372 = vpop.f32.mrb[0].mxu0
        %v2373 = vadd.f32 %v2085, %v2372
        %v2374 = vpop.f32.mrb[0].mxu0
        %2375 = vmatprep.mubr.bf16.mxu0 %v2025
        %2376 = vmatmul.mubr.bf16.gmra.mrb[0].mxu0 %v2024
        %v2377 = vpop.f32.mrb[0].mxu0
        %v2378 = vadd.f32 %v2085, %v2377
        %v2379 = vpop.f32.mrb[0].mxu0
        %v2380 = vpop.f32.mrb[0].mxu0
        %v2381 = vadd.f32 %v2085, %v2380
        %v2382 = vpop.f32.mrb[0].mxu0
        %2383 = vmatprep.mubr.bf16.mxu0 %v2027
        %2384 = vmatmul.mubr.bf16.gmra.mrb[0].mxu0 %v2026
        %v2385 = vpop.f32.mrb[0].mxu0
        %v2386 = vadd.f32 %v2085, %v2385
        %v2387 = vpop.f32.mrb[0].mxu0
        %v2388 = vpop.f32.mrb[0].mxu0
        %v2389 = vadd.f32 %v2085, %v2388
        %v2390 = vpop.f32.mrb[0].mxu0
        %2391 = vmatprep.mubr.bf16.mxu0 %v2029
        %2392 = vmatmul.mubr.bf16.gmra.mrb[0].mxu0 %v2028
        %v2393 = vpop.f32.mrb[0].mxu0
        %v2394 = vadd.f32 %v2085, %v2393
        %v2395 = vpop.f32.mrb[0].mxu0
        %v2396 = vpop.f32.mrb[0].mxu0
        %v2397 = vadd.f32 %v2085, %v2396
        %v2398 = vpop.f32.mrb[0].mxu0
        %2399 = vmatprep.mubr.bf16.mxu0 %v2031
        %2400 = vmatmul.mubr.bf16.gmra.mrb[0].mxu0 %v2030
        %v2401 = vpop.f32.mrb[0].mxu0
        %v2402 = vadd.f32 %v2085, %v2401
        %v2403 = vpop.f32.mrb[0].mxu0
        %v2404 = vpop.f32.mrb[0].mxu0
        %v2405 = vadd.f32 %v2085, %v2404
        %v2406 = vpop.f32.mrb[0].mxu0
        %2407 = vmatprep.mubr.bf16.mxu0 %v2033
        %2408 = vmatmul.mubr.bf16.gmra.mrb[0].mxu0 %v2032
        %v2409 = vpop.f32.mrb[0].mxu0
        %v2410 = vadd.f32 %v2085, %v2409
        %v2411 = vpop.f32.mrb[0].mxu0
        %v2412 = vpop.f32.mrb[0].mxu0
        %v2413 = vadd.f32 %v2085, %v2412
        %v2414 = vpop.f32.mrb[0].mxu0
        %2415 = vmatprep.mubr.bf16.mxu0 %v2035
        %2416 = vmatmul.mubr.bf16.gmra.mrb[0].mxu0 %v2034
        %v2417 = vpop.f32.mrb[0].mxu0
        %v2418 = vadd.f32 %v2085, %v2417
        %v2419 = vpop.f32.mrb[0].mxu0
        %v2420 = vpop.f32.mrb[0].mxu0
        %v2421 = vadd.f32 %v2085, %v2420
        %v2422 = vpop.f32.mrb[0].mxu0
        %2423 = vmatprep.mubr.bf16.mxu0 %v2037
        %2424 = vmatmul.mubr.bf16.gmra.mrb[0].mxu0 %v2036
        %v2425 = vpop.f32.mrb[0].mxu0
        %v2426 = vadd.f32 %v2085, %v2425
        %v2427 = vpop.f32.mrb[0].mxu0
        %v2428 = vpop.f32.mrb[0].mxu0
        %v2429 = vadd.f32 %v2085, %v2428
        %v2430 = vpop.f32.mrb[0].mxu0
        %2431 = vmatprep.mubr.bf16.mxu0 %v2039
        %2432 = vmatmul.mubr.bf16.gmra.mrb[0].mxu0 %v2038
        %v2433 = vpop.f32.mrb[0].mxu0
        %v2434 = vadd.f32 %v2085, %v2433
        %v2435 = vpop.f32.mrb[0].mxu0
        %v2436 = vpop.f32.mrb[0].mxu0
        %v2437 = vadd.f32 %v2085, %v2436
        %v2438 = vpop.f32.mrb[0].mxu0
        %2439 = vmatprep.mubr.bf16.mxu0 %v2041
        %2440 = vmatmul.mubr.bf16.gmra.mrb[0].mxu0 %v2040
        %v2441 = vpop.f32.mrb[0].mxu0
        %v2442 = vadd.f32 %v2085, %v2441
        %v2443 = vpop.f32.mrb[0].mxu0
        %v2444 = vpop.f32.mrb[0].mxu0
        %v2445 = vadd.f32 %v2085, %v2444
        %v2446 = vpop.f32.mrb[0].mxu0
        %2447 = vmatprep.mubr.bf16.mxu0 %v2043
        %2448 = vmatmul.mubr.bf16.gmra.mrb[0].mxu0 %v2042
        %v2449 = vpop.f32.mrb[0].mxu0
        %v2450 = vadd.f32 %v2085, %v2449
        %v2451 = vpop.f32.mrb[0].mxu0
        %v2452 = vpop.f32.mrb[0].mxu0
        %v2453 = vadd.f32 %v2085, %v2452
        %v2454 = vpop.f32.mrb[0].mxu0
        %2455 = vmatprep.mubr.bf16.mxu0 %v2045
        %2456 = vmatmul.mubr.bf16.gmra.mrb[0].mxu0 %v2044
        %v2457 = vpop.f32.mrb[0].mxu0
        %v2458 = vadd.f32 %v2085, %v2457
        %v2459 = vpop.f32.mrb[0].mxu0
        %v2460 = vpop.f32.mrb[0].mxu0
        %v2461 = vadd.f32 %v2085, %v2460
        %v2462 = vpop.f32.mrb[0].mxu0
        %2463 = vmatprep.mubr.bf16.mxu0 %v2047
        %2464 = vmatmul.mubr.bf16.gmra.mrb[0].mxu0 %v2046
        %v2465 = vpop.f32.mrb[0].mxu0
        %v2466 = vadd.f32 %v2085, %v2465
        %v2467 = vpop.f32.mrb[0].mxu0
        %v2468 = vpop.f32.mrb[0].mxu0
        %v2469 = vadd.f32 %v2085, %v2468
        %v2470 = vpop.f32.mrb[0].mxu0
        %2471 = vdwg.mxu0
        %2472 = vst [vmem:[%s271] sm:$0xff] %v2218
        %2473 = vst [vmem:[%s271 + $0x8] sm:$0xff] %v2221
        %2474 = vst [vmem:[%s271 + $0x10] sm:$0xff] %v2226
        %2475 = vst [vmem:[%s271 + $0x18] sm:$0xff] %v2229
        %2476 = vst [vmem:[%s271 + $0x20] sm:$0xff] %v2234
        %2477 = vst [vmem:[%s271 + $0x28] sm:$0xff] %v2237
        %2478 = vst [vmem:[%s271 + $0x30] sm:$0xff] %v2242
        %2479 = vst [vmem:[%s271 + $0x38] sm:$0xff] %v2245
        %2480 = vst [vmem:[%s271 + $0x40] sm:$0xff] %v2250
        %2481 = vst [vmem:[%s271 + $0x48] sm:$0xff] %v2253
        %2482 = vst [vmem:[%s271 + $0x50] sm:$0xff] %v2258
        %2483 = vst [vmem:[%s271 + $0x58] sm:$0xff] %v2261
        %2484 = vst [vmem:[%s271 + $0x60] sm:$0xff] %v2266
        %2485 = vst [vmem:[%s271 + $0x68] sm:$0xff] %v2269
        %2486 = vst [vmem:[%s271 + $0x70] sm:$0xff] %v2274
        %2487 = vst [vmem:[%s271 + $0x78] sm:$0xff] %v2277
        %2488 = vst [vmem:[%s271 + $0x80] sm:$0xff] %v2282
        %2489 = vst [vmem:[%s271 + $0x88] sm:$0xff] %v2285
        %2490 = vst [vmem:[%s271 + $0x90] sm:$0xff] %v2290
        %2491 = vst [vmem:[%s271 + $0x98] sm:$0xff] %v2293
        %2492 = vst [vmem:[%s271 + $0xa0] sm:$0xff] %v2298
        %2493 = vst [vmem:[%s271 + $0xa8] sm:$0xff] %v2301
        %2494 = vst [vmem:[%s271 + $0xb0] sm:$0xff] %v2306
        %2495 = vst [vmem:[%s271 + $0xb8] sm:$0xff] %v2309
        %2496 = vst [vmem:[%s271 + $0xc0] sm:$0xff] %v2314
        %2497 = vst [vmem:[%s271 + $0xc8] sm:$0xff] %v2317
        %2498 = vst [vmem:[%s271 + $0xd0] sm:$0xff] %v2322
        %2499 = vst [vmem:[%s271 + $0xd8] sm:$0xff] %v2325
        %2500 = vst [vmem:[%s271 + $0xe0] sm:$0xff] %v2330
        %2501 = vst [vmem:[%s271 + $0xe8] sm:$0xff] %v2333
        %2502 = vst [vmem:[%s271 + $0xf0] sm:$0xff] %v2338
        %2503 = vst [vmem:[%s271 + $0xf8] sm:$0xff] %v2341
        %2504 = vst [vmem:[%s271 + $0x100] sm:$0xff] %v2346
        %2505 = vst [vmem:[%s271 + $0x108] sm:$0xff] %v2349
        %2506 = vst [vmem:[%s271 + $0x110] sm:$0xff] %v2354
        %2507 = vst [vmem:[%s271 + $0x118] sm:$0xff] %v2357
        %2508 = vst [vmem:[%s271 + $0x120] sm:$0xff] %v2362
        %2509 = vst [vmem:[%s271 + $0x128] sm:$0xff] %v2365
        %2510 = vst [vmem:[%s271 + $0x130] sm:$0xff] %v2370
        %2511 = vst [vmem:[%s271 + $0x138] sm:$0xff] %v2373
        %2512 = vst [vmem:[%s271 + $0x140] sm:$0xff] %v2378
        %2513 = vst [vmem:[%s271 + $0x148] sm:$0xff] %v2381
        %2514 = vst [vmem:[%s271 + $0x150] sm:$0xff] %v2386
        %2515 = vst [vmem:[%s271 + $0x158] sm:$0xff] %v2389
        %2516 = vst [vmem:[%s271 + $0x160] sm:$0xff] %v2394
        %2517 = vst [vmem:[%s271 + $0x168] sm:$0xff] %v2397
        %2518 = vst [vmem:[%s271 + $0x170] sm:$0xff] %v2402
        %2519 = vst [vmem:[%s271 + $0x178] sm:$0xff] %v2405
        %2520 = vst [vmem:[%s271 + $0x180] sm:$0xff] %v2410
        %2521 = vst [vmem:[%s271 + $0x188] sm:$0xff] %v2413
        %2522 = vst [vmem:[%s271 + $0x190] sm:$0xff] %v2418
        %2523 = vst [vmem:[%s271 + $0x198] sm:$0xff] %v2421
        %2524 = vst [vmem:[%s271 + $0x1a0] sm:$0xff] %v2426
        %2525 = vst [vmem:[%s271 + $0x1a8] sm:$0xff] %v2429
        %2526 = vst [vmem:[%s271 + $0x1b0] sm:$0xff] %v2434
        %2527 = vst [vmem:[%s271 + $0x1b8] sm:$0xff] %v2437
        %2528 = vst [vmem:[%s271 + $0x1c0] sm:$0xff] %v2442
        %2529 = vst [vmem:[%s271 + $0x1c8] sm:$0xff] %v2445
        %2530 = vst [vmem:[%s271 + $0x1d0] sm:$0xff] %v2450
        %2531 = vst [vmem:[%s271 + $0x1d8] sm:$0xff] %v2453
        %2532 = vst [vmem:[%s271 + $0x1e0] sm:$0xff] %v2458
        %2533 = vst [vmem:[%s271 + $0x1e8] sm:$0xff] %v2461
        %2534 = vst [vmem:[%s271 + $0x1f0] sm:$0xff] %v2466
        %2535 = vst [vmem:[%s271 + $0x1f8] sm:$0xff] %v2469
        %s2536 = sand.u32 %s141, 1
        %s2537 = scalar_lea.sflag [#allocation4], %s2536
        %s2538 = sand.u32 %s141, 1
        %s2539 = smul.addr %s2538, 512
        %s2540 = scalar_lea.vmem [#allocation8], %s2539
        // Predicated region
        $region53: #{tpu_custom_call.1} parent=39 // pred_check
          %p2541 = pneg %p151
        $region54: #{tpu_custom_call.1} parent=39 // pred_check_branch
          %2543 = sbr.rel (%p2541) target = $region56
        $region55: #{tpu_custom_call.1} parent=39 // pred_region
          %s2544 = smul.u32 64, %s23
          %s2546 = ssub.s32 8192, 8192
          %2547 = vsyncadd %s2537, %s2546
          %s2548 = smul.addr %s2544, 128
          %s2549 = scalar_lea.hbm %s5, %s2548
          %s2550 = sshll.u32 %s2540, 4
          %s2551 = int_to_ptr.vmem [resolvable:$true] %s2550
          %2556 = dma.vmem_to_hbm [thread:$0]  %s2551, 8192, %s2549, %s2537, 128, 128, 8
        $region56: #{tpu_custom_call.1} parent=39 // pred_fallthru
          _
      $region40: #{tpu_custom_call.1} parent=5 // pred_fallthru
        _
      %p2557 = scmp.le.s32.totalorder 2, %s18
      // Predicated region
      $region57: #{tpu_custom_call.1} parent=5 // pred_check
        %p2558 = pneg %p2557
      $region58: #{tpu_custom_call.1} parent=5 // pred_check_branch
        %2560 = sbr.rel (%p2558) target = $region60
      $region59: #{tpu_custom_call.1} parent=5 // pred_region
        %s2561 = ssub.s32 %s18, 2
        // Predicated region
        $region61: #{tpu_custom_call.1} parent=59 // pred_check
          %p2562 = pneg %p157
        $region62: #{tpu_custom_call.1} parent=59 // pred_check_branch
          %2564 = sbr.rel (%p2562) target = $region64
        $region63: #{tpu_custom_call.1} parent=59 // pred_region
          %s2565 = sand.u32 %s142, 1
          %s2566 = scalar_lea.sflag [#allocation4], %s2565
          %s2567 = sand.u32 %s142, 1
          %s2568 = smul.addr %s2567, 512
          %s2569 = scalar_lea.vmem [#allocation8], %s2568
          %2570 = dma.done %s2566, 8192
        $region64: #{tpu_custom_call.1} parent=59 // pred_fallthru
          _
      $region60: #{tpu_custom_call.1} parent=5 // pred_fallthru
        _
    $region6: #{tpu_custom_call.1} parent=1 // loop_footer
      %s22 = sadd.s32 1, %s18
    $region7: #{tpu_custom_call.1} parent=1 // loop_footer_branch
      %17 = sbr.rel target = $region3
    $region8: #{tpu_custom_call.1} parent=1 // loop_exit
      _
    %2571 = vsyncpa [#allocation3], 1
    %s2572 = scalar_lea.sflag [#allocation3], 1
    %2573 = vsyncpa %s2572, 1
    %2574 = vsyncpa [#allocation6], 1
    %2575 = vsyncpa [#allocation4], 1
    %s2576 = scalar_lea.sflag [#allocation4], 1
    %2577 = vsyncpa %s2576, 1

</llo_original>
